<compile_context>
chip_gen: v5e
topology: v5e:2x2
jax: 0.10.0
libtpu: 0.0.40
codegen_flags: <defaults>
</compile_context>

<pallas_src>
import numpy as np
import jax
import jax.numpy as jnp
from jax import lax
from jax.experimental import pallas as pl
from jax.experimental.pallas import tpu as pltpu


# ----------------------------- kernel ---------------------------------------

def sentiment_kernel(tok_ref,                        # SMEM (B, T) int32 (scalar prefetch)
                     table_ref,                      # (V, E)  embedding table
                     wih_f_ref, whh_f_ref, b_f_ref,  # forward LSTM: (E,4H), (H,4H), (1,4H)
                     wih_b_ref, b_b_ref,             # reverse LSTM: (E,4H), (1,4H)
                     w1f_ref, w1b_ref, b1_ref,       # fc1 split:    (H,24), (H,24), (1,24)
                     w2_ref, b2_ref,                 # fc2:          (24,O), (1,O)
                     out_ref,                        # (B, O)
                     emb_ref):                       # VMEM scratch (T*B, E)
    B, T = tok_ref.shape
    H = whh_f_ref.shape[0]

    # ---- 1. in-kernel embedding gather: emb[t*B + b] = table[tokens[b, t]] ----
    for t in range(T):
        for b in range(B):
            tok = tok_ref[b, t]                      # scalar from SMEM
            emb_ref[pl.ds(t * B + b, 1), :] = table_ref[pl.ds(tok, 1), :]
    emb = emb_ref[...]                               # (T*B, E), time-major rows

    # ---- 2. hoisted input projection (forward dir): ONE matmul for all T ----
    gates_in = (jnp.dot(emb, wih_f_ref[...], preferred_element_type=jnp.float32)
                + b_f_ref[...])                      # (T*B, 4H)

    def combine(gates, c_prev):
        # gates: (B, 4H) pre-activations, PyTorch gate order (i, f, g, o).
        sg = jax.nn.sigmoid(gates)                   # full-slab EUP
        th = jnp.tanh(gates)                         # full-slab EUP
        i = sg[:, 0 * H:1 * H]
        f = sg[:, 1 * H:2 * H]
        g = th[:, 2 * H:3 * H]
        o = sg[:, 3 * H:4 * H]
        c_new = f * c_prev + i * g
        h_new = o * jnp.tanh(c_new)
        return h_new, c_new

    # ---- 3. forward recurrence, fully unrolled; loop body is only h @ W_hh ----
    whh_f = whh_f_ref[...]
    h = jnp.zeros((B, H), jnp.float32)
    c = jnp.zeros((B, H), jnp.float32)
    for t in range(T):
        g_t = gates_in[t * B:(t + 1) * B, :]         # static sublane slice
        gates = g_t + jnp.dot(h, whh_f, preferred_element_type=jnp.float32)
        h, c = combine(gates, c)
    h_fwd = h

    # ---- 4. reverse direction: one cell step on x[:, T-1] from zero state ----
    #         (h0 = 0  =>  h0 @ W_hh_b == 0, so the reverse W_hh is not needed)
    x_last = emb[(T - 1) * B:T * B, :]
    gates_b = (jnp.dot(x_last, wih_b_ref[...], preferred_element_type=jnp.float32)
               + b_b_ref[...])
    h_bwd, _ = combine(gates_b, jnp.zeros((B, H), jnp.float32))

    # ---- 5. fc1 with split weights (no 32-lane concat) + ReLU, then fc2 ----
    z = (jnp.dot(h_fwd, w1f_ref[...], preferred_element_type=jnp.float32)
         + jnp.dot(h_bwd, w1b_ref[...], preferred_element_type=jnp.float32)
         + b1_ref[...])
    z = jnp.maximum(z, 0.0)
    out = jnp.dot(z, w2_ref[...], preferred_element_type=jnp.float32) + b2_ref[...]
    out_ref[...] = out.astype(out_ref.dtype)


# ----------------------------- wrapper ---------------------------------------

def _vmem_spec(shape):
    nd = len(shape)
    return pl.BlockSpec(shape, lambda i, tok, _nd=nd: (0,) * _nd)


def sentiment_forward(tokens, params):
    """tokens: (B, T) int32. Returns (B, output_size) float32."""
    B, T = tokens.shape
    E = params["embedding"].shape[1]
    O = params["fc2_w"].shape[1]

    dense_args = (params["embedding"],
                  params["w_ih_f"], params["w_hh_f"], params["b_f"],
                  params["w_ih_b"], params["b_b"],
                  params["fc1_w_f"], params["fc1_w_b"], params["fc1_b"],
                  params["fc2_w"], params["fc2_b"])

    grid_spec = pltpu.PrefetchScalarGridSpec(
        num_scalar_prefetch=1,                       # tokens -> SMEM
        grid=(1,),
        in_specs=[_vmem_spec(a.shape) for a in dense_args],
        out_specs=pl.BlockSpec((B, O), lambda i, tok: (0, 0)),
        scratch_shapes=[pltpu.VMEM((T * B, E), jnp.float32)],
    )
    fn = pl.pallas_call(
        sentiment_kernel,
        out_shape=jax.ShapeDtypeStruct((B, O), jnp.float32),
        grid_spec=grid_spec,
        compiler_params=pltpu.CompilerParams(dimension_semantics=("arbitrary",)),
    )
    return fn(tokens.astype(jnp.int32), *dense_args)


# ------------------------- pure-JAX reference --------------------------------

def _lstm_cell_ref(x_t, h, c, w_ih, w_hh, b):
    gates = x_t @ w_ih + h @ w_hh + b
    H = h.shape[-1]
    i = jax.nn.sigmoid(gates[:, 0 * H:1 * H])
    f = jax.nn.sigmoid(gates[:, 1 * H:2 * H])
    g = jnp.tanh(gates[:, 2 * H:3 * H])
    o = jax.nn.sigmoid(gates[:, 3 * H:4 * H])
    c_new = f * c + i * g
    h_new = o * jnp.tanh(c_new)
    return h_new, c_new


def reference_forward(tokens, params):
    """Full bidirectional LSTM reference (matches the PyTorch module)."""
    emb = params["embedding"][tokens].astype(jnp.float32)      # (B, T, E)
    B, T, E = emb.shape
    H = params["w_hh_f"].shape[0]

    def run_dir(seq_bte, w_ih, w_hh, b):
        seq_tbe = jnp.transpose(seq_bte, (1, 0, 2))

        def step(carry, x_t):
            h, c = carry
            h, c = _lstm_cell_ref(x_t, h, c, w_ih, w_hh, b)
            return (h, c), h

        (_, _), hs = lax.scan(step, (jnp.zeros((B, H)), jnp.zeros((B, H))), seq_tbe)
        return hs                                              # (T, B, H)

    hs_f = run_dir(emb, params["w_ih_f"], params["w_hh_f"], params["b_f"])
    hs_b = run_dir(emb[:, ::-1, :], params["w_ih_b"], params["w_hh_b"], params["b_b"])[::-1]
    out_full = jnp.concatenate([hs_f, hs_b], axis=-1)          # (T, B, 2H)
    last = out_full[-1]                                        # == output[:, -1, :]
    fc1_w = jnp.concatenate([params["fc1_w_f"], params["fc1_w_b"]], axis=0)
    fc1 = jnp.maximum(last @ fc1_w + params["fc1_b"], 0.0)
    return fc1 @ params["fc2_w"] + params["fc2_b"]


# ----------------------------- params / main ---------------------------------

def init_params(key, vocab_size, embedding_dim, hidden_size, output_size):
    ks = jax.random.split(key, 12)
    H, E = hidden_size, embedding_dim
    s = 0.1
    return {
        "embedding": s * jax.random.normal(ks[0], (vocab_size, E), jnp.float32),
        # LSTM weights stored transposed vs PyTorch: (in_features, 4H); gate
        # order i, f, g, o along the 4H axis; bias_ih + bias_hh folded.
        "w_ih_f": s * jax.random.normal(ks[1], (E, 4 * H), jnp.float32),
        "w_hh_f": s * jax.random.normal(ks[2], (H, 4 * H), jnp.float32),
        "b_f":    s * jax.random.normal(ks[3], (1, 4 * H), jnp.float32),
        "w_ih_b": s * jax.random.normal(ks[4], (E, 4 * H), jnp.float32),
        "w_hh_b": s * jax.random.normal(ks[5], (H, 4 * H), jnp.float32),  # used by the reference only
        "b_b":    s * jax.random.normal(ks[6], (1, 4 * H), jnp.float32),
        # fc1 weight pre-split into forward/backward halves (rows 0:H / H:2H
        # of the (2H, 24) weight^T) so the kernel never concatenates h_fwd/h_bwd.
        "fc1_w_f": s * jax.random.normal(ks[7], (H, 24), jnp.float32),
        "fc1_w_b": s * jax.random.normal(ks[8], (H, 24), jnp.float32),
        "fc1_b":   s * jax.random.normal(ks[9], (1, 24), jnp.float32),
        "fc2_w":   s * jax.random.normal(ks[10], (24, output_size), jnp.float32),
        "fc2_b":   s * jax.random.normal(ks[11], (1, output_size), jnp.float32),
    }


if __name__ == "__main__":
    VOCAB, EMB, HIDDEN, OUT = 50, 16, 32, 2
    BATCH, SEQ = 2, 8

    key = jax.random.PRNGKey(0)
    kp, kt = jax.random.split(key)
    params = init_params(kp, VOCAB, EMB, HIDDEN, OUT)
    tokens = jax.random.randint(kt, (BATCH, SEQ), 0, VOCAB, dtype=jnp.int32)

    out = jax.block_until_ready(sentiment_forward(tokens, params))
    assert out.shape == (BATCH, OUT)

    ref = jax.block_until_ready(reference_forward(tokens, params))
    np.testing.assert_allclose(np.asarray(out), np.asarray(ref), atol=1e-4, rtol=1e-4)

    print("KERNEL_OK")
</pallas_src>

<mosaic_0001>
module attributes {stable_mosaic.version = 11 : i64} {
  func.func @sentiment_kernel(%arg0: i32, %arg1: memref<2x8xi32, #tpu.memory_space<smem>>, %arg2: memref<50x16xf32, #tpu.memory_space<vmem>>, %arg3: memref<16x128xf32, #tpu.memory_space<vmem>>, %arg4: memref<32x128xf32, #tpu.memory_space<vmem>>, %arg5: memref<1x128xf32, #tpu.memory_space<vmem>>, %arg6: memref<16x128xf32, #tpu.memory_space<vmem>>, %arg7: memref<1x128xf32, #tpu.memory_space<vmem>>, %arg8: memref<32x24xf32, #tpu.memory_space<vmem>>, %arg9: memref<32x24xf32, #tpu.memory_space<vmem>>, %arg10: memref<1x24xf32, #tpu.memory_space<vmem>>, %arg11: memref<24x2xf32, #tpu.memory_space<vmem>>, %arg12: memref<1x2xf32, #tpu.memory_space<vmem>>, %arg13: memref<2x2xf32, #tpu.memory_space<vmem>>, %arg14: memref<16x16xf32, #tpu.memory_space<vmem>>) attributes {dimension_semantics = [#tpu.dimension_semantics<arbitrary>], iteration_bounds = array<i64: 1>, scalar_prefetch = 1 : i64, scratch_operands = 1 : i64, tpu.core_type = #tpu.core_type<tc>, window_params = [{pipeline_mode = #tpu.pipeline_mode<synchronous>, transform_indices = @transform_0, window_bounds = array<i64: 50, 16>}, {pipeline_mode = #tpu.pipeline_mode<synchronous>, transform_indices = @transform_1, window_bounds = array<i64: 16, 128>}, {pipeline_mode = #tpu.pipeline_mode<synchronous>, transform_indices = @transform_2, window_bounds = array<i64: 32, 128>}, {pipeline_mode = #tpu.pipeline_mode<synchronous>, transform_indices = @transform_3, window_bounds = array<i64: 1, 128>}, {pipeline_mode = #tpu.pipeline_mode<synchronous>, transform_indices = @transform_4, window_bounds = array<i64: 16, 128>}, {pipeline_mode = #tpu.pipeline_mode<synchronous>, transform_indices = @transform_5, window_bounds = array<i64: 1, 128>}, {pipeline_mode = #tpu.pipeline_mode<synchronous>, transform_indices = @transform_6, window_bounds = array<i64: 32, 24>}, {pipeline_mode = #tpu.pipeline_mode<synchronous>, transform_indices = @transform_7, window_bounds = array<i64: 32, 24>}, {pipeline_mode = #tpu.pipeline_mode<synchronous>, transform_indices = @transform_8, window_bounds = array<i64: 1, 24>}, {pipeline_mode = #tpu.pipeline_mode<synchronous>, transform_indices = @transform_9, window_bounds = array<i64: 24, 2>}, {pipeline_mode = #tpu.pipeline_mode<synchronous>, transform_indices = @transform_10, window_bounds = array<i64: 1, 2>}, {pipeline_mode = #tpu.pipeline_mode<synchronous>, transform_indices = @transform_11, window_bounds = array<i64: 2, 2>}]} {
    %c0 = arith.constant 0 : index
    %c0_0 = arith.constant 0 : index
    %0 = memref.load %arg1[%c0, %c0_0] : memref<2x8xi32, #tpu.memory_space<smem>>
    %1 = arith.index_cast %0 : i32 to index
    %c0_1 = arith.constant 0 : index
    %2 = vector.load %arg2[%1, %c0_1] : memref<50x16xf32, #tpu.memory_space<vmem>>, vector<1x16xf32>
    %c0_2 = arith.constant 0 : index
    %c0_3 = arith.constant 0 : index
    %3 = vector.load %arg14[%c0_2, %c0_3] : memref<16x16xf32, #tpu.memory_space<vmem>>, vector<1x16xf32>
    tpu.vector_store %arg14[%c0_2, %c0_3], %2 {strides = array<i32>} : memref<16x16xf32, #tpu.memory_space<vmem>>, vector<1x16xf32>,
    %c1 = arith.constant 1 : index
    %c0_4 = arith.constant 0 : index
    %4 = memref.load %arg1[%c1, %c0_4] : memref<2x8xi32, #tpu.memory_space<smem>>
    %5 = arith.index_cast %4 : i32 to index
    %c0_5 = arith.constant 0 : index
    %6 = vector.load %arg2[%5, %c0_5] : memref<50x16xf32, #tpu.memory_space<vmem>>, vector<1x16xf32>
    %c1_6 = arith.constant 1 : index
    %c0_7 = arith.constant 0 : index
    %7 = vector.load %arg14[%c1_6, %c0_7] : memref<16x16xf32, #tpu.memory_space<vmem>>, vector<1x16xf32>
    tpu.vector_store %arg14[%c1_6, %c0_7], %6 {strides = array<i32>} : memref<16x16xf32, #tpu.memory_space<vmem>>, vector<1x16xf32>,
    %c0_8 = arith.constant 0 : index
    %c1_9 = arith.constant 1 : index
    %8 = memref.load %arg1[%c0_8, %c1_9] : memref<2x8xi32, #tpu.memory_space<smem>>
    %9 = arith.index_cast %8 : i32 to index
    %c0_10 = arith.constant 0 : index
    %10 = vector.load %arg2[%9, %c0_10] : memref<50x16xf32, #tpu.memory_space<vmem>>, vector<1x16xf32>
    %c2 = arith.constant 2 : index
    %c0_11 = arith.constant 0 : index
    %11 = vector.load %arg14[%c2, %c0_11] : memref<16x16xf32, #tpu.memory_space<vmem>>, vector<1x16xf32>
    tpu.vector_store %arg14[%c2, %c0_11], %10 {strides = array<i32>} : memref<16x16xf32, #tpu.memory_space<vmem>>, vector<1x16xf32>,
    %c1_12 = arith.constant 1 : index
    %c1_13 = arith.constant 1 : index
    %12 = memref.load %arg1[%c1_12, %c1_13] : memref<2x8xi32, #tpu.memory_space<smem>>
    %13 = arith.index_cast %12 : i32 to index
    %c0_14 = arith.constant 0 : index
    %14 = vector.load %arg2[%13, %c0_14] : memref<50x16xf32, #tpu.memory_space<vmem>>, vector<1x16xf32>
    %c3 = arith.constant 3 : index
    %c0_15 = arith.constant 0 : index
    %15 = vector.load %arg14[%c3, %c0_15] : memref<16x16xf32, #tpu.memory_space<vmem>>, vector<1x16xf32>
    tpu.vector_store %arg14[%c3, %c0_15], %14 {strides = array<i32>} : memref<16x16xf32, #tpu.memory_space<vmem>>, vector<1x16xf32>,
    %c0_16 = arith.constant 0 : index
    %c2_17 = arith.constant 2 : index
    %16 = memref.load %arg1[%c0_16, %c2_17] : memref<2x8xi32, #tpu.memory_space<smem>>
    %17 = arith.index_cast %16 : i32 to index
    %c0_18 = arith.constant 0 : index
    %18 = vector.load %arg2[%17, %c0_18] : memref<50x16xf32, #tpu.memory_space<vmem>>, vector<1x16xf32>
    %c4 = arith.constant 4 : index
    %c0_19 = arith.constant 0 : index
    %19 = vector.load %arg14[%c4, %c0_19] : memref<16x16xf32, #tpu.memory_space<vmem>>, vector<1x16xf32>
    tpu.vector_store %arg14[%c4, %c0_19], %18 {strides = array<i32>} : memref<16x16xf32, #tpu.memory_space<vmem>>, vector<1x16xf32>,
    %c1_20 = arith.constant 1 : index
    %c2_21 = arith.constant 2 : index
    %20 = memref.load %arg1[%c1_20, %c2_21] : memref<2x8xi32, #tpu.memory_space<smem>>
    %21 = arith.index_cast %20 : i32 to index
    %c0_22 = arith.constant 0 : index
    %22 = vector.load %arg2[%21, %c0_22] : memref<50x16xf32, #tpu.memory_space<vmem>>, vector<1x16xf32>
    %c5 = arith.constant 5 : index
    %c0_23 = arith.constant 0 : index
    %23 = vector.load %arg14[%c5, %c0_23] : memref<16x16xf32, #tpu.memory_space<vmem>>, vector<1x16xf32>
    tpu.vector_store %arg14[%c5, %c0_23], %22 {strides = array<i32>} : memref<16x16xf32, #tpu.memory_space<vmem>>, vector<1x16xf32>,
    %c0_24 = arith.constant 0 : index
    %c3_25 = arith.constant 3 : index
    %24 = memref.load %arg1[%c0_24, %c3_25] : memref<2x8xi32, #tpu.memory_space<smem>>
    %25 = arith.index_cast %24 : i32 to index
    %c0_26 = arith.constant 0 : index
    %26 = vector.load %arg2[%25, %c0_26] : memref<50x16xf32, #tpu.memory_space<vmem>>, vector<1x16xf32>
    %c6 = arith.constant 6 : index
    %c0_27 = arith.constant 0 : index
    %27 = vector.load %arg14[%c6, %c0_27] : memref<16x16xf32, #tpu.memory_space<vmem>>, vector<1x16xf32>
    tpu.vector_store %arg14[%c6, %c0_27], %26 {strides = array<i32>} : memref<16x16xf32, #tpu.memory_space<vmem>>, vector<1x16xf32>,
    %c1_28 = arith.constant 1 : index
    %c3_29 = arith.constant 3 : index
    %28 = memref.load %arg1[%c1_28, %c3_29] : memref<2x8xi32, #tpu.memory_space<smem>>
    %29 = arith.index_cast %28 : i32 to index
    %c0_30 = arith.constant 0 : index
    %30 = vector.load %arg2[%29, %c0_30] : memref<50x16xf32, #tpu.memory_space<vmem>>, vector<1x16xf32>
    %c7 = arith.constant 7 : index
    %c0_31 = arith.constant 0 : index
    %31 = vector.load %arg14[%c7, %c0_31] : memref<16x16xf32, #tpu.memory_space<vmem>>, vector<1x16xf32>
    tpu.vector_store %arg14[%c7, %c0_31], %30 {strides = array<i32>} : memref<16x16xf32, #tpu.memory_space<vmem>>, vector<1x16xf32>,
    %c0_32 = arith.constant 0 : index
    %c4_33 = arith.constant 4 : index
    %32 = memref.load %arg1[%c0_32, %c4_33] : memref<2x8xi32, #tpu.memory_space<smem>>
    %33 = arith.index_cast %32 : i32 to index
    %c0_34 = arith.constant 0 : index
    %34 = vector.load %arg2[%33, %c0_34] : memref<50x16xf32, #tpu.memory_space<vmem>>, vector<1x16xf32>
    %c8 = arith.constant 8 : index
    %c0_35 = arith.constant 0 : index
    %35 = vector.load %arg14[%c8, %c0_35] : memref<16x16xf32, #tpu.memory_space<vmem>>, vector<1x16xf32>
    tpu.vector_store %arg14[%c8, %c0_35], %34 {strides = array<i32>} : memref<16x16xf32, #tpu.memory_space<vmem>>, vector<1x16xf32>,
    %c1_36 = arith.constant 1 : index
    %c4_37 = arith.constant 4 : index
    %36 = memref.load %arg1[%c1_36, %c4_37] : memref<2x8xi32, #tpu.memory_space<smem>>
    %37 = arith.index_cast %36 : i32 to index
    %c0_38 = arith.constant 0 : index
    %38 = vector.load %arg2[%37, %c0_38] : memref<50x16xf32, #tpu.memory_space<vmem>>, vector<1x16xf32>
    %c9 = arith.constant 9 : index
    %c0_39 = arith.constant 0 : index
    %39 = vector.load %arg14[%c9, %c0_39] : memref<16x16xf32, #tpu.memory_space<vmem>>, vector<1x16xf32>
    tpu.vector_store %arg14[%c9, %c0_39], %38 {strides = array<i32>} : memref<16x16xf32, #tpu.memory_space<vmem>>, vector<1x16xf32>,
    %c0_40 = arith.constant 0 : index
    %c5_41 = arith.constant 5 : index
    %40 = memref.load %arg1[%c0_40, %c5_41] : memref<2x8xi32, #tpu.memory_space<smem>>
    %41 = arith.index_cast %40 : i32 to index
    %c0_42 = arith.constant 0 : index
    %42 = vector.load %arg2[%41, %c0_42] : memref<50x16xf32, #tpu.memory_space<vmem>>, vector<1x16xf32>
    %c10 = arith.constant 10 : index
    %c0_43 = arith.constant 0 : index
    %43 = vector.load %arg14[%c10, %c0_43] : memref<16x16xf32, #tpu.memory_space<vmem>>, vector<1x16xf32>
    tpu.vector_store %arg14[%c10, %c0_43], %42 {strides = array<i32>} : memref<16x16xf32, #tpu.memory_space<vmem>>, vector<1x16xf32>,
    %c1_44 = arith.constant 1 : index
    %c5_45 = arith.constant 5 : index
    %44 = memref.load %arg1[%c1_44, %c5_45] : memref<2x8xi32, #tpu.memory_space<smem>>
    %45 = arith.index_cast %44 : i32 to index
    %c0_46 = arith.constant 0 : index
    %46 = vector.load %arg2[%45, %c0_46] : memref<50x16xf32, #tpu.memory_space<vmem>>, vector<1x16xf32>
    %c11 = arith.constant 11 : index
    %c0_47 = arith.constant 0 : index
    %47 = vector.load %arg14[%c11, %c0_47] : memref<16x16xf32, #tpu.memory_space<vmem>>, vector<1x16xf32>
    tpu.vector_store %arg14[%c11, %c0_47], %46 {strides = array<i32>} : memref<16x16xf32, #tpu.memory_space<vmem>>, vector<1x16xf32>,
    %c0_48 = arith.constant 0 : index
    %c6_49 = arith.constant 6 : index
    %48 = memref.load %arg1[%c0_48, %c6_49] : memref<2x8xi32, #tpu.memory_space<smem>>
    %49 = arith.index_cast %48 : i32 to index
    %c0_50 = arith.constant 0 : index
    %50 = vector.load %arg2[%49, %c0_50] : memref<50x16xf32, #tpu.memory_space<vmem>>, vector<1x16xf32>
    %c12 = arith.constant 12 : index
    %c0_51 = arith.constant 0 : index
    %51 = vector.load %arg14[%c12, %c0_51] : memref<16x16xf32, #tpu.memory_space<vmem>>, vector<1x16xf32>
    tpu.vector_store %arg14[%c12, %c0_51], %50 {strides = array<i32>} : memref<16x16xf32, #tpu.memory_space<vmem>>, vector<1x16xf32>,
    %c1_52 = arith.constant 1 : index
    %c6_53 = arith.constant 6 : index
    %52 = memref.load %arg1[%c1_52, %c6_53] : memref<2x8xi32, #tpu.memory_space<smem>>
    %53 = arith.index_cast %52 : i32 to index
    %c0_54 = arith.constant 0 : index
    %54 = vector.load %arg2[%53, %c0_54] : memref<50x16xf32, #tpu.memory_space<vmem>>, vector<1x16xf32>
    %c13 = arith.constant 13 : index
    %c0_55 = arith.constant 0 : index
    %55 = vector.load %arg14[%c13, %c0_55] : memref<16x16xf32, #tpu.memory_space<vmem>>, vector<1x16xf32>
    tpu.vector_store %arg14[%c13, %c0_55], %54 {strides = array<i32>} : memref<16x16xf32, #tpu.memory_space<vmem>>, vector<1x16xf32>,
    %c0_56 = arith.constant 0 : index
    %c7_57 = arith.constant 7 : index
    %56 = memref.load %arg1[%c0_56, %c7_57] : memref<2x8xi32, #tpu.memory_space<smem>>
    %57 = arith.index_cast %56 : i32 to index
    %c0_58 = arith.constant 0 : index
    %58 = vector.load %arg2[%57, %c0_58] : memref<50x16xf32, #tpu.memory_space<vmem>>, vector<1x16xf32>
    %c14 = arith.constant 14 : index
    %c0_59 = arith.constant 0 : index
    %59 = vector.load %arg14[%c14, %c0_59] : memref<16x16xf32, #tpu.memory_space<vmem>>, vector<1x16xf32>
    tpu.vector_store %arg14[%c14, %c0_59], %58 {strides = array<i32>} : memref<16x16xf32, #tpu.memory_space<vmem>>, vector<1x16xf32>,
    %c1_60 = arith.constant 1 : index
    %c7_61 = arith.constant 7 : index
    %60 = memref.load %arg1[%c1_60, %c7_61] : memref<2x8xi32, #tpu.memory_space<smem>>
    %61 = arith.index_cast %60 : i32 to index
    %c0_62 = arith.constant 0 : index
    %62 = vector.load %arg2[%61, %c0_62] : memref<50x16xf32, #tpu.memory_space<vmem>>, vector<1x16xf32>
    %c15 = arith.constant 15 : index
    %c0_63 = arith.constant 0 : index
    %63 = vector.load %arg14[%c15, %c0_63] : memref<16x16xf32, #tpu.memory_space<vmem>>, vector<1x16xf32>
    tpu.vector_store %arg14[%c15, %c0_63], %62 {strides = array<i32>} : memref<16x16xf32, #tpu.memory_space<vmem>>, vector<1x16xf32>,
    %c0_64 = arith.constant 0 : index
    %c0_65 = arith.constant 0 : index
    %64 = vector.load %arg14[%c0_64, %c0_65] : memref<16x16xf32, #tpu.memory_space<vmem>>, vector<16x16xf32>
    %c0_66 = arith.constant 0 : index
    %c0_67 = arith.constant 0 : index
    %65 = vector.load %arg3[%c0_66, %c0_67] : memref<16x128xf32, #tpu.memory_space<vmem>>, vector<16x128xf32>
    %cst = arith.constant dense<0.000000e+00> : vector<16x128xf32>
    %66 = tpu.matmul %64, %65, %cst {dimension_numbers = #tpu.dot_dimension_numbers<[1], [0], [0], [1], [0, 0, 1, 1], [], []>} : vector<16x16xf32>, vector<16x128xf32>, vector<16x128xf32> -> vector<16x128xf32>
    %c0_68 = arith.constant 0 : index
    %c0_69 = arith.constant 0 : index
    %67 = vector.load %arg5[%c0_68, %c0_69] : memref<1x128xf32, #tpu.memory_space<vmem>>, vector<1x128xf32>
    %68 = vector.broadcast %67 : vector<1x128xf32> to vector<16x128xf32>
    %69 = arith.addf %66, %68 : vector<16x128xf32>
    %c0_70 = arith.constant 0 : index
    %c0_71 = arith.constant 0 : index
    %70 = vector.load %arg4[%c0_70, %c0_71] : memref<32x128xf32, #tpu.memory_space<vmem>>, vector<32x128xf32>
    %cst_72 = arith.constant 0.000000e+00 : f32
    %71 = vector.broadcast %cst_72 : f32 to vector<2x32xf32>
    %cst_73 = arith.constant 0.000000e+00 : f32
    %72 = vector.broadcast %cst_73 : f32 to vector<2x32xf32>
    %73 = vector.extract_strided_slice %69 {offsets = [0, 0], sizes = [2, 128], strides = [1, 1]} : vector<16x128xf32> to vector<2x128xf32>
    %cst_74 = arith.constant dense<0.000000e+00> : vector<2x128xf32>
    %74 = tpu.matmul %71, %70, %cst_74 {dimension_numbers = #tpu.dot_dimension_numbers<[1], [0], [0], [1], [0, 0, 1, 1], [], []>} : vector<2x32xf32>, vector<32x128xf32>, vector<2x128xf32> -> vector<2x128xf32>
    %75 = arith.addf %73, %74 : vector<2x128xf32>
    %76 = arith.negf %75 : vector<2x128xf32>
    %77 = math.exp %76 : vector<2x128xf32>
    %cst_75 = arith.constant 1.000000e+00 : f32
    %78 = vector.broadcast %cst_75 : f32 to vector<2x128xf32>
    %79 = arith.addf %78, %77 : vector<2x128xf32>
    %80 = arith.divf %78, %79 : vector<2x128xf32>
    %81 = math.tanh %75 : vector<2x128xf32>
    %82 = vector.extract_strided_slice %80 {offsets = [0, 0], sizes = [2, 32], strides = [1, 1]} : vector<2x128xf32> to vector<2x32xf32>
    %83 = vector.extract_strided_slice %80 {offsets = [0, 32], sizes = [2, 32], strides = [1, 1]} : vector<2x128xf32> to vector<2x32xf32>
    %84 = vector.extract_strided_slice %81 {offsets = [0, 64], sizes = [2, 32], strides = [1, 1]} : vector<2x128xf32> to vector<2x32xf32>
    %85 = vector.extract_strided_slice %80 {offsets = [0, 96], sizes = [2, 32], strides = [1, 1]} : vector<2x128xf32> to vector<2x32xf32>
    %86 = arith.mulf %83, %72 : vector<2x32xf32>
    %87 = arith.mulf %82, %84 : vector<2x32xf32>
    %88 = arith.addf %86, %87 : vector<2x32xf32>
    %89 = math.tanh %88 : vector<2x32xf32>
    %90 = arith.mulf %85, %89 : vector<2x32xf32>
    %91 = vector.extract_strided_slice %69 {offsets = [2, 0], sizes = [2, 128], strides = [1, 1]} : vector<16x128xf32> to vector<2x128xf32>
    %cst_76 = arith.constant dense<0.000000e+00> : vector<2x128xf32>
    %92 = tpu.matmul %90, %70, %cst_76 {dimension_numbers = #tpu.dot_dimension_numbers<[1], [0], [0], [1], [0, 0, 1, 1], [], []>} : vector<2x32xf32>, vector<32x128xf32>, vector<2x128xf32> -> vector<2x128xf32>
    %93 = arith.addf %91, %92 : vector<2x128xf32>
    %94 = arith.negf %93 : vector<2x128xf32>
    %95 = math.exp %94 : vector<2x128xf32>
    %cst_77 = arith.constant 1.000000e+00 : f32
    %96 = vector.broadcast %cst_77 : f32 to vector<2x128xf32>
    %97 = arith.addf %96, %95 : vector<2x128xf32>
    %98 = arith.divf %96, %97 : vector<2x128xf32>
    %99 = math.tanh %93 : vector<2x128xf32>
    %100 = vector.extract_strided_slice %98 {offsets = [0, 0], sizes = [2, 32], strides = [1, 1]} : vector<2x128xf32> to vector<2x32xf32>
    %101 = vector.extract_strided_slice %98 {offsets = [0, 32], sizes = [2, 32], strides = [1, 1]} : vector<2x128xf32> to vector<2x32xf32>
    %102 = vector.extract_strided_slice %99 {offsets = [0, 64], sizes = [2, 32], strides = [1, 1]} : vector<2x128xf32> to vector<2x32xf32>
    %103 = vector.extract_strided_slice %98 {offsets = [0, 96], sizes = [2, 32], strides = [1, 1]} : vector<2x128xf32> to vector<2x32xf32>
    %104 = arith.mulf %101, %88 : vector<2x32xf32>
    %105 = arith.mulf %100, %102 : vector<2x32xf32>
    %106 = arith.addf %104, %105 : vector<2x32xf32>
    %107 = math.tanh %106 : vector<2x32xf32>
    %108 = arith.mulf %103, %107 : vector<2x32xf32>
    %109 = vector.extract_strided_slice %69 {offsets = [4, 0], sizes = [2, 128], strides = [1, 1]} : vector<16x128xf32> to vector<2x128xf32>
    %cst_78 = arith.constant dense<0.000000e+00> : vector<2x128xf32>
    %110 = tpu.matmul %108, %70, %cst_78 {dimension_numbers = #tpu.dot_dimension_numbers<[1], [0], [0], [1], [0, 0, 1, 1], [], []>} : vector<2x32xf32>, vector<32x128xf32>, vector<2x128xf32> -> vector<2x128xf32>
    %111 = arith.addf %109, %110 : vector<2x128xf32>
    %112 = arith.negf %111 : vector<2x128xf32>
    %113 = math.exp %112 : vector<2x128xf32>
    %cst_79 = arith.constant 1.000000e+00 : f32
    %114 = vector.broadcast %cst_79 : f32 to vector<2x128xf32>
    %115 = arith.addf %114, %113 : vector<2x128xf32>
    %116 = arith.divf %114, %115 : vector<2x128xf32>
    %117 = math.tanh %111 : vector<2x128xf32>
    %118 = vector.extract_strided_slice %116 {offsets = [0, 0], sizes = [2, 32], strides = [1, 1]} : vector<2x128xf32> to vector<2x32xf32>
    %119 = vector.extract_strided_slice %116 {offsets = [0, 32], sizes = [2, 32], strides = [1, 1]} : vector<2x128xf32> to vector<2x32xf32>
    %120 = vector.extract_strided_slice %117 {offsets = [0, 64], sizes = [2, 32], strides = [1, 1]} : vector<2x128xf32> to vector<2x32xf32>
    %121 = vector.extract_strided_slice %116 {offsets = [0, 96], sizes = [2, 32], strides = [1, 1]} : vector<2x128xf32> to vector<2x32xf32>
    %122 = arith.mulf %119, %106 : vector<2x32xf32>
    %123 = arith.mulf %118, %120 : vector<2x32xf32>
    %124 = arith.addf %122, %123 : vector<2x32xf32>
    %125 = math.tanh %124 : vector<2x32xf32>
    %126 = arith.mulf %121, %125 : vector<2x32xf32>
    %127 = vector.extract_strided_slice %69 {offsets = [6, 0], sizes = [2, 128], strides = [1, 1]} : vector<16x128xf32> to vector<2x128xf32>
    %cst_80 = arith.constant dense<0.000000e+00> : vector<2x128xf32>
    %128 = tpu.matmul %126, %70, %cst_80 {dimension_numbers = #tpu.dot_dimension_numbers<[1], [0], [0], [1], [0, 0, 1, 1], [], []>} : vector<2x32xf32>, vector<32x128xf32>, vector<2x128xf32> -> vector<2x128xf32>
    %129 = arith.addf %127, %128 : vector<2x128xf32>
    %130 = arith.negf %129 : vector<2x128xf32>
    %131 = math.exp %130 : vector<2x128xf32>
    %cst_81 = arith.constant 1.000000e+00 : f32
    %132 = vector.broadcast %cst_81 : f32 to vector<2x128xf32>
    %133 = arith.addf %132, %131 : vector<2x128xf32>
    %134 = arith.divf %132, %133 : vector<2x128xf32>
    %135 = math.tanh %129 : vector<2x128xf32>
    %136 = vector.extract_strided_slice %134 {offsets = [0, 0], sizes = [2, 32], strides = [1, 1]} : vector<2x128xf32> to vector<2x32xf32>
    %137 = vector.extract_strided_slice %134 {offsets = [0, 32], sizes = [2, 32], strides = [1, 1]} : vector<2x128xf32> to vector<2x32xf32>
    %138 = vector.extract_strided_slice %135 {offsets = [0, 64], sizes = [2, 32], strides = [1, 1]} : vector<2x128xf32> to vector<2x32xf32>
    %139 = vector.extract_strided_slice %134 {offsets = [0, 96], sizes = [2, 32], strides = [1, 1]} : vector<2x128xf32> to vector<2x32xf32>
    %140 = arith.mulf %137, %124 : vector<2x32xf32>
    %141 = arith.mulf %136, %138 : vector<2x32xf32>
    %142 = arith.addf %140, %141 : vector<2x32xf32>
    %143 = math.tanh %142 : vector<2x32xf32>
    %144 = arith.mulf %139, %143 : vector<2x32xf32>
    %145 = vector.extract_strided_slice %69 {offsets = [8, 0], sizes = [2, 128], strides = [1, 1]} : vector<16x128xf32> to vector<2x128xf32>
    %cst_82 = arith.constant dense<0.000000e+00> : vector<2x128xf32>
    %146 = tpu.matmul %144, %70, %cst_82 {dimension_numbers = #tpu.dot_dimension_numbers<[1], [0], [0], [1], [0, 0, 1, 1], [], []>} : vector<2x32xf32>, vector<32x128xf32>, vector<2x128xf32> -> vector<2x128xf32>
    %147 = arith.addf %145, %146 : vector<2x128xf32>
    %148 = arith.negf %147 : vector<2x128xf32>
    %149 = math.exp %148 : vector<2x128xf32>
    %cst_83 = arith.constant 1.000000e+00 : f32
    %150 = vector.broadcast %cst_83 : f32 to vector<2x128xf32>
    %151 = arith.addf %150, %149 : vector<2x128xf32>
    %152 = arith.divf %150, %151 : vector<2x128xf32>
    %153 = math.tanh %147 : vector<2x128xf32>
    %154 = vector.extract_strided_slice %152 {offsets = [0, 0], sizes = [2, 32], strides = [1, 1]} : vector<2x128xf32> to vector<2x32xf32>
    %155 = vector.extract_strided_slice %152 {offsets = [0, 32], sizes = [2, 32], strides = [1, 1]} : vector<2x128xf32> to vector<2x32xf32>
    %156 = vector.extract_strided_slice %153 {offsets = [0, 64], sizes = [2, 32], strides = [1, 1]} : vector<2x128xf32> to vector<2x32xf32>
    %157 = vector.extract_strided_slice %152 {offsets = [0, 96], sizes = [2, 32], strides = [1, 1]} : vector<2x128xf32> to vector<2x32xf32>
    %158 = arith.mulf %155, %142 : vector<2x32xf32>
    %159 = arith.mulf %154, %156 : vector<2x32xf32>
    %160 = arith.addf %158, %159 : vector<2x32xf32>
    %161 = math.tanh %160 : vector<2x32xf32>
    %162 = arith.mulf %157, %161 : vector<2x32xf32>
    %163 = vector.extract_strided_slice %69 {offsets = [10, 0], sizes = [2, 128], strides = [1, 1]} : vector<16x128xf32> to vector<2x128xf32>
    %cst_84 = arith.constant dense<0.000000e+00> : vector<2x128xf32>
    %164 = tpu.matmul %162, %70, %cst_84 {dimension_numbers = #tpu.dot_dimension_numbers<[1], [0], [0], [1], [0, 0, 1, 1], [], []>} : vector<2x32xf32>, vector<32x128xf32>, vector<2x128xf32> -> vector<2x128xf32>
    %165 = arith.addf %163, %164 : vector<2x128xf32>
    %166 = arith.negf %165 : vector<2x128xf32>
    %167 = math.exp %166 : vector<2x128xf32>
    %cst_85 = arith.constant 1.000000e+00 : f32
    %168 = vector.broadcast %cst_85 : f32 to vector<2x128xf32>
    %169 = arith.addf %168, %167 : vector<2x128xf32>
    %170 = arith.divf %168, %169 : vector<2x128xf32>
    %171 = math.tanh %165 : vector<2x128xf32>
    %172 = vector.extract_strided_slice %170 {offsets = [0, 0], sizes = [2, 32], strides = [1, 1]} : vector<2x128xf32> to vector<2x32xf32>
    %173 = vector.extract_strided_slice %170 {offsets = [0, 32], sizes = [2, 32], strides = [1, 1]} : vector<2x128xf32> to vector<2x32xf32>
    %174 = vector.extract_strided_slice %171 {offsets = [0, 64], sizes = [2, 32], strides = [1, 1]} : vector<2x128xf32> to vector<2x32xf32>
    %175 = vector.extract_strided_slice %170 {offsets = [0, 96], sizes = [2, 32], strides = [1, 1]} : vector<2x128xf32> to vector<2x32xf32>
    %176 = arith.mulf %173, %160 : vector<2x32xf32>
    %177 = arith.mulf %172, %174 : vector<2x32xf32>
    %178 = arith.addf %176, %177 : vector<2x32xf32>
    %179 = math.tanh %178 : vector<2x32xf32>
    %180 = arith.mulf %175, %179 : vector<2x32xf32>
    %181 = vector.extract_strided_slice %69 {offsets = [12, 0], sizes = [2, 128], strides = [1, 1]} : vector<16x128xf32> to vector<2x128xf32>
    %cst_86 = arith.constant dense<0.000000e+00> : vector<2x128xf32>
    %182 = tpu.matmul %180, %70, %cst_86 {dimension_numbers = #tpu.dot_dimension_numbers<[1], [0], [0], [1], [0, 0, 1, 1], [], []>} : vector<2x32xf32>, vector<32x128xf32>, vector<2x128xf32> -> vector<2x128xf32>
    %183 = arith.addf %181, %182 : vector<2x128xf32>
    %184 = arith.negf %183 : vector<2x128xf32>
    %185 = math.exp %184 : vector<2x128xf32>
    %cst_87 = arith.constant 1.000000e+00 : f32
    %186 = vector.broadcast %cst_87 : f32 to vector<2x128xf32>
    %187 = arith.addf %186, %185 : vector<2x128xf32>
    %188 = arith.divf %186, %187 : vector<2x128xf32>
    %189 = math.tanh %183 : vector<2x128xf32>
    %190 = vector.extract_strided_slice %188 {offsets = [0, 0], sizes = [2, 32], strides = [1, 1]} : vector<2x128xf32> to vector<2x32xf32>
    %191 = vector.extract_strided_slice %188 {offsets = [0, 32], sizes = [2, 32], strides = [1, 1]} : vector<2x128xf32> to vector<2x32xf32>
    %192 = vector.extract_strided_slice %189 {offsets = [0, 64], sizes = [2, 32], strides = [1, 1]} : vector<2x128xf32> to vector<2x32xf32>
    %193 = vector.extract_strided_slice %188 {offsets = [0, 96], sizes = [2, 32], strides = [1, 1]} : vector<2x128xf32> to vector<2x32xf32>
    %194 = arith.mulf %191, %178 : vector<2x32xf32>
    %195 = arith.mulf %190, %192 : vector<2x32xf32>
    %196 = arith.addf %194, %195 : vector<2x32xf32>
    %197 = math.tanh %196 : vector<2x32xf32>
    %198 = arith.mulf %193, %197 : vector<2x32xf32>
    %199 = vector.extract_strided_slice %69 {offsets = [14, 0], sizes = [2, 128], strides = [1, 1]} : vector<16x128xf32> to vector<2x128xf32>
    %cst_88 = arith.constant dense<0.000000e+00> : vector<2x128xf32>
    %200 = tpu.matmul %198, %70, %cst_88 {dimension_numbers = #tpu.dot_dimension_numbers<[1], [0], [0], [1], [0, 0, 1, 1], [], []>} : vector<2x32xf32>, vector<32x128xf32>, vector<2x128xf32> -> vector<2x128xf32>
    %201 = arith.addf %199, %200 : vector<2x128xf32>
    %202 = arith.negf %201 : vector<2x128xf32>
    %203 = math.exp %202 : vector<2x128xf32>
    %cst_89 = arith.constant 1.000000e+00 : f32
    %204 = vector.broadcast %cst_89 : f32 to vector<2x128xf32>
    %205 = arith.addf %204, %203 : vector<2x128xf32>
    %206 = arith.divf %204, %205 : vector<2x128xf32>
    %207 = math.tanh %201 : vector<2x128xf32>
    %208 = vector.extract_strided_slice %206 {offsets = [0, 0], sizes = [2, 32], strides = [1, 1]} : vector<2x128xf32> to vector<2x32xf32>
    %209 = vector.extract_strided_slice %206 {offsets = [0, 32], sizes = [2, 32], strides = [1, 1]} : vector<2x128xf32> to vector<2x32xf32>
    %210 = vector.extract_strided_slice %207 {offsets = [0, 64], sizes = [2, 32], strides = [1, 1]} : vector<2x128xf32> to vector<2x32xf32>
    %211 = vector.extract_strided_slice %206 {offsets = [0, 96], sizes = [2, 32], strides = [1, 1]} : vector<2x128xf32> to vector<2x32xf32>
    %212 = arith.mulf %209, %196 : vector<2x32xf32>
    %213 = arith.mulf %208, %210 : vector<2x32xf32>
    %214 = arith.addf %212, %213 : vector<2x32xf32>
    %215 = math.tanh %214 : vector<2x32xf32>
    %216 = arith.mulf %211, %215 : vector<2x32xf32>
    %217 = vector.extract_strided_slice %64 {offsets = [14, 0], sizes = [2, 16], strides = [1, 1]} : vector<16x16xf32> to vector<2x16xf32>
    %c0_90 = arith.constant 0 : index
    %c0_91 = arith.constant 0 : index
    %218 = vector.load %arg6[%c0_90, %c0_91] : memref<16x128xf32, #tpu.memory_space<vmem>>, vector<16x128xf32>
    %cst_92 = arith.constant dense<0.000000e+00> : vector<2x128xf32>
    %219 = tpu.matmul %217, %218, %cst_92 {dimension_numbers = #tpu.dot_dimension_numbers<[1], [0], [0], [1], [0, 0, 1, 1], [], []>} : vector<2x16xf32>, vector<16x128xf32>, vector<2x128xf32> -> vector<2x128xf32>
    %c0_93 = arith.constant 0 : index
    %c0_94 = arith.constant 0 : index
    %220 = vector.load %arg7[%c0_93, %c0_94] : memref<1x128xf32, #tpu.memory_space<vmem>>, vector<1x128xf32>
    %221 = vector.broadcast %220 : vector<1x128xf32> to vector<2x128xf32>
    %222 = arith.addf %219, %221 : vector<2x128xf32>
    %cst_95 = arith.constant 0.000000e+00 : f32
    %223 = vector.broadcast %cst_95 : f32 to vector<2x32xf32>
    %224 = arith.negf %222 : vector<2x128xf32>
    %225 = math.exp %224 : vector<2x128xf32>
    %cst_96 = arith.constant 1.000000e+00 : f32
    %226 = vector.broadcast %cst_96 : f32 to vector<2x128xf32>
    %227 = arith.addf %226, %225 : vector<2x128xf32>
    %228 = arith.divf %226, %227 : vector<2x128xf32>
    %229 = math.tanh %222 : vector<2x128xf32>
    %230 = vector.extract_strided_slice %228 {offsets = [0, 0], sizes = [2, 32], strides = [1, 1]} : vector<2x128xf32> to vector<2x32xf32>
    %231 = vector.extract_strided_slice %228 {offsets = [0, 32], sizes = [2, 32], strides = [1, 1]} : vector<2x128xf32> to vector<2x32xf32>
    %232 = vector.extract_strided_slice %229 {offsets = [0, 64], sizes = [2, 32], strides = [1, 1]} : vector<2x128xf32> to vector<2x32xf32>
    %233 = vector.extract_strided_slice %228 {offsets = [0, 96], sizes = [2, 32], strides = [1, 1]} : vector<2x128xf32> to vector<2x32xf32>
    %234 = arith.mulf %231, %223 : vector<2x32xf32>
    %235 = arith.mulf %230, %232 : vector<2x32xf32>
    %236 = arith.addf %234, %235 : vector<2x32xf32>
    %237 = math.tanh %236 : vector<2x32xf32>
    %238 = arith.mulf %233, %237 : vector<2x32xf32>
    %c0_97 = arith.constant 0 : index
    %c0_98 = arith.constant 0 : index
    %239 = vector.load %arg8[%c0_97, %c0_98] : memref<32x24xf32, #tpu.memory_space<vmem>>, vector<32x24xf32>
    %cst_99 = arith.constant dense<0.000000e+00> : vector<2x24xf32>
    %240 = tpu.matmul %216, %239, %cst_99 {dimension_numbers = #tpu.dot_dimension_numbers<[1], [0], [0], [1], [0, 0, 1, 1], [], []>} : vector<2x32xf32>, vector<32x24xf32>, vector<2x24xf32> -> vector<2x24xf32>
    %c0_100 = arith.constant 0 : index
    %c0_101 = arith.constant 0 : index
    %241 = vector.load %arg9[%c0_100, %c0_101] : memref<32x24xf32, #tpu.memory_space<vmem>>, vector<32x24xf32>
    %cst_102 = arith.constant dense<0.000000e+00> : vector<2x24xf32>
    %242 = tpu.matmul %238, %241, %cst_102 {dimension_numbers = #tpu.dot_dimension_numbers<[1], [0], [0], [1], [0, 0, 1, 1], [], []>} : vector<2x32xf32>, vector<32x24xf32>, vector<2x24xf32> -> vector<2x24xf32>
    %243 = arith.addf %240, %242 : vector<2x24xf32>
    %c0_103 = arith.constant 0 : index
    %c0_104 = arith.constant 0 : index
    %244 = vector.load %arg10[%c0_103, %c0_104] : memref<1x24xf32, #tpu.memory_space<vmem>>, vector<1x24xf32>
    %245 = vector.broadcast %244 : vector<1x24xf32> to vector<2x24xf32>
    %246 = arith.addf %243, %245 : vector<2x24xf32>
    %cst_105 = arith.constant 0.000000e+00 : f32
    %247 = vector.broadcast %cst_105 : f32 to vector<2x24xf32>
    %248 = arith.maximumf %246, %247 : vector<2x24xf32>
    %c0_106 = arith.constant 0 : index
    %c0_107 = arith.constant 0 : index
    %249 = vector.load %arg11[%c0_106, %c0_107] : memref<24x2xf32, #tpu.memory_space<vmem>>, vector<24x2xf32>
    %cst_108 = arith.constant dense<0.000000e+00> : vector<2x2xf32>
    %250 = tpu.matmul %248, %249, %cst_108 {dimension_numbers = #tpu.dot_dimension_numbers<[1], [0], [0], [1], [0, 0, 1, 1], [], []>} : vector<2x24xf32>, vector<24x2xf32>, vector<2x2xf32> -> vector<2x2xf32>
    %c0_109 = arith.constant 0 : index
    %c0_110 = arith.constant 0 : index
    %251 = vector.load %arg12[%c0_109, %c0_110] : memref<1x2xf32, #tpu.memory_space<vmem>>, vector<1x2xf32>
    %252 = vector.broadcast %251 : vector<1x2xf32> to vector<2x2xf32>
    %253 = arith.addf %250, %252 : vector<2x2xf32>
    %c0_111 = arith.constant 0 : index
    %c0_112 = arith.constant 0 : index
    %254 = vector.load %arg13[%c0_111, %c0_112] : memref<2x2xf32, #tpu.memory_space<vmem>>, vector<2x2xf32>
    tpu.vector_store %arg13[%c0_111, %c0_112], %253 {strides = array<i32>} : memref<2x2xf32, #tpu.memory_space<vmem>>, vector<2x2xf32>,
    return
  }
  func.func @transform_0(%arg0: i32, %arg1: memref<2x8xi32, #tpu.memory_space<smem>>) -> (i32, i32) {
    %c0_i32 = arith.constant 0 : i32
    %c0_i32_0 = arith.constant 0 : i32
    %c0_i32_1 = arith.constant 0 : i32
    return %c0_i32, %c0_i32_0 : i32, i32
  }
  func.func @transform_1(%arg0: i32, %arg1: memref<2x8xi32, #tpu.memory_space<smem>>) -> (i32, i32) {
    %c0_i32 = arith.constant 0 : i32
    %c0_i32_0 = arith.constant 0 : i32
    %c0_i32_1 = arith.constant 0 : i32
    return %c0_i32, %c0_i32_0 : i32, i32
  }
  func.func @transform_2(%arg0: i32, %arg1: memref<2x8xi32, #tpu.memory_space<smem>>) -> (i32, i32) {
    %c0_i32 = arith.constant 0 : i32
    %c0_i32_0 = arith.constant 0 : i32
    %c0_i32_1 = arith.constant 0 : i32
    return %c0_i32, %c0_i32_0 : i32, i32
  }
  func.func @transform_3(%arg0: i32, %arg1: memref<2x8xi32, #tpu.memory_space<smem>>) -> (i32, i32) {
    %c0_i32 = arith.constant 0 : i32
    %c0_i32_0 = arith.constant 0 : i32
    %c0_i32_1 = arith.constant 0 : i32
    return %c0_i32, %c0_i32_0 : i32, i32
  }
  func.func @transform_4(%arg0: i32, %arg1: memref<2x8xi32, #tpu.memory_space<smem>>) -> (i32, i32) {
    %c0_i32 = arith.constant 0 : i32
    %c0_i32_0 = arith.constant 0 : i32
    %c0_i32_1 = arith.constant 0 : i32
    return %c0_i32, %c0_i32_0 : i32, i32
  }
  func.func @transform_5(%arg0: i32, %arg1: memref<2x8xi32, #tpu.memory_space<smem>>) -> (i32, i32) {
    %c0_i32 = arith.constant 0 : i32
    %c0_i32_0 = arith.constant 0 : i32
    %c0_i32_1 = arith.constant 0 : i32
    return %c0_i32, %c0_i32_0 : i32, i32
  }
  func.func @transform_6(%arg0: i32, %arg1: memref<2x8xi32, #tpu.memory_space<smem>>) -> (i32, i32) {
    %c0_i32 = arith.constant 0 : i32
    %c0_i32_0 = arith.constant 0 : i32
    %c0_i32_1 = arith.constant 0 : i32
    return %c0_i32, %c0_i32_0 : i32, i32
  }
  func.func @transform_7(%arg0: i32, %arg1: memref<2x8xi32, #tpu.memory_space<smem>>) -> (i32, i32) {
    %c0_i32 = arith.constant 0 : i32
    %c0_i32_0 = arith.constant 0 : i32
    %c0_i32_1 = arith.constant 0 : i32
    return %c0_i32, %c0_i32_0 : i32, i32
  }
  func.func @transform_8(%arg0: i32, %arg1: memref<2x8xi32, #tpu.memory_space<smem>>) -> (i32, i32) {
    %c0_i32 = arith.constant 0 : i32
    %c0_i32_0 = arith.constant 0 : i32
    %c0_i32_1 = arith.constant 0 : i32
    return %c0_i32, %c0_i32_0 : i32, i32
  }
  func.func @transform_9(%arg0: i32, %arg1: memref<2x8xi32, #tpu.memory_space<smem>>) -> (i32, i32) {
    %c0_i32 = arith.constant 0 : i32
    %c0_i32_0 = arith.constant 0 : i32
    %c0_i32_1 = arith.constant 0 : i32
    return %c0_i32, %c0_i32_0 : i32, i32
  }
  func.func @transform_10(%arg0: i32, %arg1: memref<2x8xi32, #tpu.memory_space<smem>>) -> (i32, i32) {
    %c0_i32 = arith.constant 0 : i32
    %c0_i32_0 = arith.constant 0 : i32
    %c0_i32_1 = arith.constant 0 : i32
    return %c0_i32, %c0_i32_0 : i32, i32
  }
  func.func @transform_11(%arg0: i32, %arg1: memref<2x8xi32, #tpu.memory_space<smem>>) -> (i32, i32) {
    %c0_i32 = arith.constant 0 : i32
    %c0_i32_0 = arith.constant 0 : i32
    %c0_i32_1 = arith.constant 0 : i32
    return %c0_i32, %c0_i32_0 : i32, i32
  }
}

</mosaic_0001>

<llo_original>
// kernel: tpu_custom_call.1
$region0: #{tpu_custom_call.1}
  #allocation0 [shape = 'u32[]', space=smem, size = 0x4, offset = 0x4, fixed_abs, tag = 'smem constant byte address 0x4 - core index']
  #allocation1 [shape = 'u32[72,128]{1,0:T(1,128)}', space=vmem, size = 0x9000, scoped, tag = 'internal scratch']
  #allocation2 [shape = 'f32[16,16]{1,0:T(8,128)}', space=vmem, size = 0x2000, scoped, tag = 'scratch operand']
  #allocation3 [shape = 's32[1]{0}', space=sflag, size = 0x4, scoped, tag = 'scoped memory for tpu_custom_call.1']
  #allocation4 [shape = 'u8[1024]{0}', space=smem, size = 0x400, scoped, tag = 'prefetched SMEM operand 0']
  %s0 = inlined_call_operand.vmem [shape: s32[2,8], index: 0, kind: input, shape index: {}]
  %s1 = inlined_call_operand.vmem [shape: f32[50,16], index: 1, kind: input, shape index: {}]
  %s2 = inlined_call_operand.vmem [shape: f32[16,128], index: 2, kind: input, shape index: {}]
  %s3 = inlined_call_operand.vmem [shape: f32[32,128], index: 3, kind: input, shape index: {}]
  %s4 = inlined_call_operand.vmem [shape: f32[1,128], index: 4, kind: input, shape index: {}]
  %s5 = inlined_call_operand.vmem [shape: f32[16,128], index: 5, kind: input, shape index: {}]
  %s6 = inlined_call_operand.vmem [shape: f32[1,128], index: 6, kind: input, shape index: {}]
  %s7 = inlined_call_operand.vmem [shape: f32[32,24], index: 7, kind: input, shape index: {}]
  %s8 = inlined_call_operand.vmem [shape: f32[32,24], index: 8, kind: input, shape index: {}]
  %s9 = inlined_call_operand.vmem [shape: f32[1,24], index: 9, kind: input, shape index: {}]
  %s10 = inlined_call_operand.vmem [shape: f32[24,2], index: 10, kind: input, shape index: {}]
  %s11 = inlined_call_operand.vmem [shape: f32[1,2], index: 11, kind: input, shape index: {}]
  %s12 = inlined_call_operand.hbm [shape: f32[2,2], index: 12, kind: output, shape index: {}]
  %s13 = sld [smem:[#allocation0]]
  $region54: #{tpu_custom_call.1} parent=0
    _
  %s15 = ssub.s32 1, %s13
  %s16 = scalar_select 0, %s15, %s13
  %s18 = sshll.u32 %s0, 4
  %s19 = int_to_ptr.vmem [resolvable:$true] %s18
  %21 = dma.vmem_to_smem %s19, 32, [#allocation4], [#allocation3]
  %23 = dma.done [#allocation3], 32
  %24 = sfence
  $region1: #{tpu_custom_call.1} parent=0
    #allocation5 [shape = 'u8[1024]{0}', space=vmem, size = 0x400, scoped, tag = 'output window, operand 0, single buffered']
    #allocation6 [shape = 's32[1]{0}', space=sflag, size = 0x4, scoped, tag = 'scoped memory for tpu_custom_call.1']
    %25 = vsyncpa [#allocation6], 0
    // Predicated region
    $region2: #{tpu_custom_call.1} parent=1 // pred_check
      _
    $region3: #{tpu_custom_call.1} parent=1 // pred_check_branch
      %27 = sbr.rel (0) target = $region5
    $region4: #{tpu_custom_call.1} parent=1 // pred_region
      _
    $region5: #{tpu_custom_call.1} parent=1 // pred_fallthru
      _
    // Predicated region
    $region6: #{tpu_custom_call.1} parent=1 // pred_check
      _
    $region7: #{tpu_custom_call.1} parent=1 // pred_check_branch
      %29 = sbr.rel (0) target = $region9
    $region8: #{tpu_custom_call.1} parent=1 // pred_region
      _
    $region9: #{tpu_custom_call.1} parent=1 // pred_fallthru
      _
    // Predicated region
    $region10: #{tpu_custom_call.1} parent=1 // pred_check
      _
    $region11: #{tpu_custom_call.1} parent=1 // pred_check_branch
      %31 = sbr.rel (0) target = $region13
    $region12: #{tpu_custom_call.1} parent=1 // pred_region
      _
    $region13: #{tpu_custom_call.1} parent=1 // pred_fallthru
      _
    // Predicated region
    $region14: #{tpu_custom_call.1} parent=1 // pred_check
      _
    $region15: #{tpu_custom_call.1} parent=1 // pred_check_branch
      %33 = sbr.rel (0) target = $region17
    $region16: #{tpu_custom_call.1} parent=1 // pred_region
      _
    $region17: #{tpu_custom_call.1} parent=1 // pred_fallthru
      _
    // Predicated region
    $region18: #{tpu_custom_call.1} parent=1 // pred_check
      _
    $region19: #{tpu_custom_call.1} parent=1 // pred_check_branch
      %35 = sbr.rel (0) target = $region21
    $region20: #{tpu_custom_call.1} parent=1 // pred_region
      _
    $region21: #{tpu_custom_call.1} parent=1 // pred_fallthru
      _
    // Predicated region
    $region22: #{tpu_custom_call.1} parent=1 // pred_check
      _
    $region23: #{tpu_custom_call.1} parent=1 // pred_check_branch
      %37 = sbr.rel (0) target = $region25
    $region24: #{tpu_custom_call.1} parent=1 // pred_region
      _
    $region25: #{tpu_custom_call.1} parent=1 // pred_fallthru
      _
    // Predicated region
    $region26: #{tpu_custom_call.1} parent=1 // pred_check
      _
    $region27: #{tpu_custom_call.1} parent=1 // pred_check_branch
      %39 = sbr.rel (0) target = $region29
    $region28: #{tpu_custom_call.1} parent=1 // pred_region
      _
    $region29: #{tpu_custom_call.1} parent=1 // pred_fallthru
      _
    // Predicated region
    $region30: #{tpu_custom_call.1} parent=1 // pred_check
      _
    $region31: #{tpu_custom_call.1} parent=1 // pred_check_branch
      %41 = sbr.rel (0) target = $region33
    $region32: #{tpu_custom_call.1} parent=1 // pred_region
      _
    $region33: #{tpu_custom_call.1} parent=1 // pred_fallthru
      _
    // Predicated region
    $region34: #{tpu_custom_call.1} parent=1 // pred_check
      _
    $region35: #{tpu_custom_call.1} parent=1 // pred_check_branch
      %43 = sbr.rel (0) target = $region37
    $region36: #{tpu_custom_call.1} parent=1 // pred_region
      _
    $region37: #{tpu_custom_call.1} parent=1 // pred_fallthru
      _
    // Predicated region
    $region38: #{tpu_custom_call.1} parent=1 // pred_check
      _
    $region39: #{tpu_custom_call.1} parent=1 // pred_check_branch
      %45 = sbr.rel (0) target = $region41
    $region40: #{tpu_custom_call.1} parent=1 // pred_region
      _
    $region41: #{tpu_custom_call.1} parent=1 // pred_fallthru
      _
    // Predicated region
    $region42: #{tpu_custom_call.1} parent=1 // pred_check
      _
    $region43: #{tpu_custom_call.1} parent=1 // pred_check_branch
      %47 = sbr.rel (0) target = $region45
    $region44: #{tpu_custom_call.1} parent=1 // pred_region
      _
    $region45: #{tpu_custom_call.1} parent=1 // pred_fallthru
      _
    %s48 = sld [smem:[#allocation4]]
    %s49 = scalar_lea.vmem %s1, %s48
    %v50 = vld [vmem:[%s49] sm:$0x1]
    %vm51 = vcmask 122880
    %52 = vst.msk [vmem:[#allocation2] sm:$0x1] %vm51, %v50
    %s53 = sld [smem:[#allocation4 + $0x80]]
    %s54 = scalar_lea.vmem %s1, %s53
    %v55 = vld [vmem:[%s54] sm:$0x1]
    %56 = vst.msk [vmem:[#allocation2 + $0x1] sm:$0x1] %vm51, %v55
    %s57 = sld [smem:[#allocation4 + $0x1]]
    %s58 = scalar_lea.vmem %s1, %s57
    %v59 = vld [vmem:[%s58] sm:$0x1]
    %60 = vst.msk [vmem:[#allocation2 + $0x2] sm:$0x1] %vm51, %v59
    %s61 = sld [smem:[#allocation4 + $0x81]]
    %s62 = scalar_lea.vmem %s1, %s61
    %v63 = vld [vmem:[%s62] sm:$0x1]
    %64 = vst.msk [vmem:[#allocation2 + $0x3] sm:$0x1] %vm51, %v63
    %s65 = sld [smem:[#allocation4 + $0x2]]
    %s66 = scalar_lea.vmem %s1, %s65
    %v67 = vld [vmem:[%s66] sm:$0x1]
    %68 = vst.msk [vmem:[#allocation2 + $0x4] sm:$0x1] %vm51, %v67
    %s69 = sld [smem:[#allocation4 + $0x82]]
    %s70 = scalar_lea.vmem %s1, %s69
    %v71 = vld [vmem:[%s70] sm:$0x1]
    %72 = vst.msk [vmem:[#allocation2 + $0x5] sm:$0x1] %vm51, %v71
    %s73 = sld [smem:[#allocation4 + $0x3]]
    %s74 = scalar_lea.vmem %s1, %s73
    %v75 = vld [vmem:[%s74] sm:$0x1]
    %76 = vst.msk [vmem:[#allocation2 + $0x6] sm:$0x1] %vm51, %v75
    %s77 = sld [smem:[#allocation4 + $0x83]]
    %s78 = scalar_lea.vmem %s1, %s77
    %v79 = vld [vmem:[%s78] sm:$0x1]
    %80 = vst.msk [vmem:[#allocation2 + $0x7] sm:$0x1] %vm51, %v79
    %s81 = sld [smem:[#allocation4 + $0x4]]
    %s82 = scalar_lea.vmem %s1, %s81
    %v83 = vld [vmem:[%s82] sm:$0x1]
    %84 = vst.msk [vmem:[#allocation2 + $0x8] sm:$0x1] %vm51, %v83
    %s85 = sld [smem:[#allocation4 + $0x84]]
    %s86 = scalar_lea.vmem %s1, %s85
    %v87 = vld [vmem:[%s86] sm:$0x1]
    %88 = vst.msk [vmem:[#allocation2 + $0x9] sm:$0x1] %vm51, %v87
    %s89 = sld [smem:[#allocation4 + $0x5]]
    %s90 = scalar_lea.vmem %s1, %s89
    %v91 = vld [vmem:[%s90] sm:$0x1]
    %92 = vst.msk [vmem:[#allocation2 + $0xa] sm:$0x1] %vm51, %v91
    %s93 = sld [smem:[#allocation4 + $0x85]]
    %s94 = scalar_lea.vmem %s1, %s93
    %v95 = vld [vmem:[%s94] sm:$0x1]
    %96 = vst.msk [vmem:[#allocation2 + $0xb] sm:$0x1] %vm51, %v95
    %s97 = sld [smem:[#allocation4 + $0x6]]
    %s98 = scalar_lea.vmem %s1, %s97
    %v99 = vld [vmem:[%s98] sm:$0x1]
    %100 = vst.msk [vmem:[#allocation2 + $0xc] sm:$0x1] %vm51, %v99
    %s101 = sld [smem:[#allocation4 + $0x86]]
    %s102 = scalar_lea.vmem %s1, %s101
    %v103 = vld [vmem:[%s102] sm:$0x1]
    %104 = vst.msk [vmem:[#allocation2 + $0xd] sm:$0x1] %vm51, %v103
    %s105 = sld [smem:[#allocation4 + $0x7]]
    %s106 = scalar_lea.vmem %s1, %s105
    %v107 = vld [vmem:[%s106] sm:$0x1]
    %108 = vst.msk [vmem:[#allocation2 + $0xe] sm:$0x1] %vm51, %v107
    %s109 = sld [smem:[#allocation4 + $0x87]]
    %s110 = scalar_lea.vmem %s1, %s109
    %v111 = vld [vmem:[%s110] sm:$0x1]
    %112 = vst.msk [vmem:[#allocation2 + $0xf] sm:$0x1] %vm51, %v111
    %v113 = vld [vmem:[#allocation2] sm:$0xff]
    %v114 = vld [vmem:[#allocation2 + $0x8] sm:$0xff]
    %v115 = vld [vmem:[%s2] sm:$0xff]
    %v116 = vld [vmem:[%s2 + $0x8] sm:$0xff]
    %v117 = vld [vmem:[%s4] sm:$0x1]
    %v119 = vperm.slane %v117, 0
    %vm121 = vcmask 130048
    %v123 = vsel %vm121, %v113, 0
    %v126 = vsel %vm121, %v114, 0
    %128 = vmatpush.msra.mxu0 0.0
    %129 = vmatpush.msra.mxu0 0.0
    %130 = vmatpush.msra.mxu0 0.0
    %131 = vmatpush.msra.mxu0 0.0
    %132 = vmatpush.msra.mxu0 0.0
    %133 = vmatpush.msra.mxu0 0.0
    %134 = vmatpush.msra.mxu0 0.0
    %135 = vmatpush.msra.mxu0 0.0
    %136 = vmatpush.msra.mxu0 0.0
    %137 = vmatpush.msra.mxu0 0.0
    %138 = vmatpush.msra.mxu0 0.0
    %139 = vmatpush.msra.mxu0 0.0
    %140 = vmatpush.msra.mxu0 0.0
    %141 = vmatpush.msra.mxu0 0.0
    %142 = vmatpush.msra.mxu0 %v116
    %143 = vmatpush.msra.mxu0 %v115
    %144 = vmatmul.f32.gmra.mxu0 %v123
    %v145 = vpop.f32.mrf.mxu0
    %v146 = vadd.f32 %v119, %v145
    %147 = vmatmul.f32.gmra.mxu0 %v126
    %v148 = vpop.f32.mrf.mxu0
    %v149 = vadd.f32 %v119, %v148
    %150 = vdwg.mxu0
    %v151 = vld [vmem:[%s3] sm:$0xff]
    %v152 = vld [vmem:[%s3 + $0x8] sm:$0xff]
    %v153 = vld [vmem:[%s3 + $0x10] sm:$0xff]
    %v154 = vld [vmem:[%s3 + $0x18] sm:$0xff]
    %vm155 = vcmask 261120
    %v157 = vsel %vm155, 0.0, 0
    %159 = vmatpush.msra.mxu0 0.0
    %160 = vmatpush.msra.mxu0 0.0
    %161 = vmatpush.msra.mxu0 0.0
    %162 = vmatpush.msra.mxu0 0.0
    %163 = vmatpush.msra.mxu0 0.0
    %164 = vmatpush.msra.mxu0 0.0
    %165 = vmatpush.msra.mxu0 0.0
    %166 = vmatpush.msra.mxu0 0.0
    %167 = vmatpush.msra.mxu0 0.0
    %168 = vmatpush.msra.mxu0 0.0
    %169 = vmatpush.msra.mxu0 0.0
    %170 = vmatpush.msra.mxu0 0.0
    %171 = vmatpush.msra.mxu0 %v154
    %172 = vmatpush.msra.mxu0 %v153
    %173 = vmatpush.msra.mxu0 %v152
    %174 = vmatpush.msra.mxu0 %v151
    %175 = vmatmul.f32.gmra.mxu0 %v157
    %v176 = vpop.f32.mrf.mxu0
    %v177 = vadd.f32 0.0, %v176
    %178 = vdwg.mxu0
    %v179 = vadd.f32 %v146, %v177
    %v180 = vxor.u32 %v179, 2147483648
    %v181 = vmul.f32 %v180, 1.442695
    %v182 = vpow.pop %v181
    %v183 = vadd.f32 %v182, 1.0
    %v184 = vrcp.pop %v183
    %v185 = vmul.f32 %v183, %v184
    %v186 = vsub.f32 1.0, %v185
    %v187 = vmul.f32 %v184, %v186
    %v188 = vadd.f32 %v184, %v187
    %vm189 = vweird.f32 %v183
    %vm190 = vweird.f32 %v184
    %vm191 = vmor %vm189, %vm190
    %v192 = vsel %vm191, %v184, %v188
    %v193 = vand.u32 2147483647, %v183
    %vm194 = vcmp.eq.f32.partialorder %v193, 8.507059e+37
    %v195 = vand.u32 %v183, 2147483648
    %v196 = vor.u32 1.1754944e-38, %v195
    %v197 = vsel %vm194, %v196, %v192
    %v198 = vmul.f32 1.0, %v197
    %v199 = vtanh.pop %v179
    %v200 = vmul.f32 %v198, 0.0
    %202 = vrot.lane.b32.xlu0 %v199, 64
    %v203 = vpop.permute.xlu0 %202
    %v205 = vmul.f32 %v198, %v203
    %207 = vrot.lane.b32.xlu0 %v205, 32
    %v208 = vpop.permute.xlu0 %207
    %v210 = vadd.f32 %v200, %v208
    %v211 = vtanh.pop %v210
    %213 = vrot.lane.b32.xlu0 %v211, 64
    %v214 = vpop.permute.xlu0 %213
    %v216 = vmul.f32 %v198, %v214
    %218 = vrot.lane.b32.xlu0 %v216, 32
    %v219 = vpop.permute.xlu0 %218
    %v220 = vsel %vm155, %v219, 0
    %222 = vmatpush.msra.mxu0 0.0
    %223 = vmatpush.msra.mxu0 0.0
    %224 = vmatpush.msra.mxu0 0.0
    %225 = vmatpush.msra.mxu0 0.0
    %226 = vmatpush.msra.mxu0 0.0
    %227 = vmatpush.msra.mxu0 0.0
    %228 = vmatpush.msra.mxu0 0.0
    %229 = vmatpush.msra.mxu0 0.0
    %230 = vmatpush.msra.mxu0 0.0
    %231 = vmatpush.msra.mxu0 0.0
    %232 = vmatpush.msra.mxu0 0.0
    %233 = vmatpush.msra.mxu0 0.0
    %234 = vmatpush.msra.mxu0 %v154
    %235 = vmatpush.msra.mxu0 %v153
    %236 = vmatpush.msra.mxu0 %v152
    %237 = vmatpush.msra.mxu0 %v151
    %238 = vmatmul.f32.gmra.mxu0 %v220
    %v239 = vpop.f32.mrf.mxu0
    %v240 = vadd.f32 0.0, %v239
    %241 = vdwg.mxu0
    %v243 = vrot.slane %v240, 6
    %v245 = vadd.f32 %v146, %v243
    %v246 = vxor.u32 %v245, 2147483648
    %v247 = vmul.f32 %v246, 1.442695
    %v248 = vpow.pop %v247
    %v249 = vadd.f32 %v248, 1.0
    %v250 = vrcp.pop %v249
    %v251 = vmul.f32 %v249, %v250
    %v252 = vsub.f32 1.0, %v251
    %v253 = vmul.f32 %v250, %v252
    %v254 = vadd.f32 %v250, %v253
    %vm255 = vweird.f32 %v249
    %vm256 = vweird.f32 %v250
    %vm257 = vmor %vm255, %vm256
    %v258 = vsel %vm257, %v250, %v254
    %v259 = vand.u32 2147483647, %v249
    %vm260 = vcmp.eq.f32.partialorder %v259, 8.507059e+37
    %v261 = vand.u32 %v249, 2147483648
    %v262 = vor.u32 1.1754944e-38, %v261
    %v263 = vsel %vm260, %v262, %v258
    %v264 = vmul.f32 1.0, %v263
    %v265 = vtanh.pop %v245
    %v267 = vrot.slane %v210, 6
    %v269 = vmul.f32 %v264, %v267
    %271 = vrot.lane.b32.xlu0 %v265, 64
    %v272 = vpop.permute.xlu0 %271
    %v274 = vmul.f32 %v264, %v272
    %276 = vrot.lane.b32.xlu0 %v274, 32
    %v277 = vpop.permute.xlu0 %276
    %v279 = vadd.f32 %v269, %v277
    %v280 = vtanh.pop %v279
    %282 = vrot.lane.b32.xlu0 %v280, 64
    %v283 = vpop.permute.xlu0 %282
    %v285 = vmul.f32 %v264, %v283
    %v287 = vrot.slane %v285, 2
    %288 = vrot.lane.b32.xlu0 %v287, 32
    %v289 = vpop.permute.xlu0 %288
    %v290 = vsel %vm155, %v289, 0
    %292 = vmatpush.msra.mxu0 0.0
    %293 = vmatpush.msra.mxu0 0.0
    %294 = vmatpush.msra.mxu0 0.0
    %295 = vmatpush.msra.mxu0 0.0
    %296 = vmatpush.msra.mxu0 0.0
    %297 = vmatpush.msra.mxu0 0.0
    %298 = vmatpush.msra.mxu0 0.0
    %299 = vmatpush.msra.mxu0 0.0
    %300 = vmatpush.msra.mxu0 0.0
    %301 = vmatpush.msra.mxu0 0.0
    %302 = vmatpush.msra.mxu0 0.0
    %303 = vmatpush.msra.mxu0 0.0
    %304 = vmatpush.msra.mxu0 %v154
    %305 = vmatpush.msra.mxu0 %v153
    %306 = vmatpush.msra.mxu0 %v152
    %307 = vmatpush.msra.mxu0 %v151
    %308 = vmatmul.f32.gmra.mxu0 %v290
    %v309 = vpop.f32.mrf.mxu0
    %v310 = vadd.f32 0.0, %v309
    %311 = vdwg.mxu0
    %v313 = vrot.slane %v310, 4
    %v315 = vadd.f32 %v146, %v313
    %v316 = vxor.u32 %v315, 2147483648
    %v317 = vmul.f32 %v316, 1.442695
    %v318 = vpow.pop %v317
    %v319 = vadd.f32 %v318, 1.0
    %v320 = vrcp.pop %v319
    %v321 = vmul.f32 %v319, %v320
    %v322 = vsub.f32 1.0, %v321
    %v323 = vmul.f32 %v320, %v322
    %v324 = vadd.f32 %v320, %v323
    %vm325 = vweird.f32 %v319
    %vm326 = vweird.f32 %v320
    %vm327 = vmor %vm325, %vm326
    %v328 = vsel %vm327, %v320, %v324
    %v329 = vand.u32 2147483647, %v319
    %vm330 = vcmp.eq.f32.partialorder %v329, 8.507059e+37
    %v331 = vand.u32 %v319, 2147483648
    %v332 = vor.u32 1.1754944e-38, %v331
    %v333 = vsel %vm330, %v332, %v328
    %v334 = vmul.f32 1.0, %v333
    %v335 = vtanh.pop %v315
    %v337 = vrot.slane %v279, 6
    %v339 = vmul.f32 %v334, %v337
    %341 = vrot.lane.b32.xlu0 %v335, 64
    %v342 = vpop.permute.xlu0 %341
    %v344 = vmul.f32 %v334, %v342
    %346 = vrot.lane.b32.xlu0 %v344, 32
    %v347 = vpop.permute.xlu0 %346
    %v349 = vadd.f32 %v339, %v347
    %v350 = vtanh.pop %v349
    %352 = vrot.lane.b32.xlu0 %v350, 64
    %v353 = vpop.permute.xlu0 %352
    %v355 = vmul.f32 %v334, %v353
    %v357 = vrot.slane %v355, 4
    %358 = vrot.lane.b32.xlu0 %v357, 32
    %v359 = vpop.permute.xlu0 %358
    %v360 = vsel %vm155, %v359, 0
    %362 = vmatpush.msra.mxu0 0.0
    %363 = vmatpush.msra.mxu0 0.0
    %364 = vmatpush.msra.mxu0 0.0
    %365 = vmatpush.msra.mxu0 0.0
    %366 = vmatpush.msra.mxu0 0.0
    %367 = vmatpush.msra.mxu0 0.0
    %368 = vmatpush.msra.mxu0 0.0
    %369 = vmatpush.msra.mxu0 0.0
    %370 = vmatpush.msra.mxu0 0.0
    %371 = vmatpush.msra.mxu0 0.0
    %372 = vmatpush.msra.mxu0 0.0
    %373 = vmatpush.msra.mxu0 0.0
    %374 = vmatpush.msra.mxu0 %v154
    %375 = vmatpush.msra.mxu0 %v153
    %376 = vmatpush.msra.mxu0 %v152
    %377 = vmatpush.msra.mxu0 %v151
    %378 = vmatmul.f32.gmra.mxu0 %v360
    %v379 = vpop.f32.mrf.mxu0
    %v380 = vadd.f32 0.0, %v379
    %381 = vdwg.mxu0
    %v383 = vrot.slane %v380, 2
    %v385 = vadd.f32 %v146, %v383
    %v386 = vxor.u32 %v385, 2147483648
    %v387 = vmul.f32 %v386, 1.442695
    %v388 = vpow.pop %v387
    %v389 = vadd.f32 %v388, 1.0
    %v390 = vrcp.pop %v389
    %v391 = vmul.f32 %v389, %v390
    %v392 = vsub.f32 1.0, %v391
    %v393 = vmul.f32 %v390, %v392
    %v394 = vadd.f32 %v390, %v393
    %vm395 = vweird.f32 %v389
    %vm396 = vweird.f32 %v390
    %vm397 = vmor %vm395, %vm396
    %v398 = vsel %vm397, %v390, %v394
    %v399 = vand.u32 2147483647, %v389
    %vm400 = vcmp.eq.f32.partialorder %v399, 8.507059e+37
    %v401 = vand.u32 %v389, 2147483648
    %v402 = vor.u32 1.1754944e-38, %v401
    %v403 = vsel %vm400, %v402, %v398
    %v404 = vmul.f32 1.0, %v403
    %v405 = vtanh.pop %v385
    %v407 = vrot.slane %v349, 6
    %v409 = vmul.f32 %v404, %v407
    %411 = vrot.lane.b32.xlu0 %v405, 64
    %v412 = vpop.permute.xlu0 %411
    %v414 = vmul.f32 %v404, %v412
    %416 = vrot.lane.b32.xlu0 %v414, 32
    %v417 = vpop.permute.xlu0 %416
    %v419 = vadd.f32 %v409, %v417
    %v420 = vtanh.pop %v419
    %422 = vrot.lane.b32.xlu0 %v420, 64
    %v423 = vpop.permute.xlu0 %422
    %v425 = vmul.f32 %v404, %v423
    %v427 = vrot.slane %v425, 6
    %428 = vrot.lane.b32.xlu0 %v427, 32
    %v429 = vpop.permute.xlu0 %428
    %v430 = vsel %vm155, %v429, 0
    %432 = vmatpush.msra.mxu0 0.0
    %433 = vmatpush.msra.mxu0 0.0
    %434 = vmatpush.msra.mxu0 0.0
    %435 = vmatpush.msra.mxu0 0.0
    %436 = vmatpush.msra.mxu0 0.0
    %437 = vmatpush.msra.mxu0 0.0
    %438 = vmatpush.msra.mxu0 0.0
    %439 = vmatpush.msra.mxu0 0.0
    %440 = vmatpush.msra.mxu0 0.0
    %441 = vmatpush.msra.mxu0 0.0
    %442 = vmatpush.msra.mxu0 0.0
    %443 = vmatpush.msra.mxu0 0.0
    %444 = vmatpush.msra.mxu0 %v154
    %445 = vmatpush.msra.mxu0 %v153
    %446 = vmatpush.msra.mxu0 %v152
    %447 = vmatpush.msra.mxu0 %v151
    %448 = vmatmul.f32.gmra.mxu0 %v430
    %v449 = vpop.f32.mrf.mxu0
    %v450 = vadd.f32 0.0, %v449
    %451 = vdwg.mxu0
    %v452 = vadd.f32 %v149, %v450
    %v453 = vxor.u32 %v452, 2147483648
    %v454 = vmul.f32 %v453, 1.442695
    %v455 = vpow.pop %v454
    %v456 = vadd.f32 %v455, 1.0
    %v457 = vrcp.pop %v456
    %v458 = vmul.f32 %v456, %v457
    %v459 = vsub.f32 1.0, %v458
    %v460 = vmul.f32 %v457, %v459
    %v461 = vadd.f32 %v457, %v460
    %vm462 = vweird.f32 %v456
    %vm463 = vweird.f32 %v457
    %vm464 = vmor %vm462, %vm463
    %v465 = vsel %vm464, %v457, %v461
    %v466 = vand.u32 2147483647, %v456
    %vm467 = vcmp.eq.f32.partialorder %v466, 8.507059e+37
    %v468 = vand.u32 %v456, 2147483648
    %v469 = vor.u32 1.1754944e-38, %v468
    %v470 = vsel %vm467, %v469, %v465
    %v471 = vmul.f32 1.0, %v470
    %v472 = vtanh.pop %v452
    %v474 = vrot.slane %v419, 6
    %v476 = vmul.f32 %v471, %v474
    %478 = vrot.lane.b32.xlu0 %v472, 64
    %v479 = vpop.permute.xlu0 %478
    %v481 = vmul.f32 %v471, %v479
    %483 = vrot.lane.b32.xlu0 %v481, 32
    %v484 = vpop.permute.xlu0 %483
    %v486 = vadd.f32 %v476, %v484
    %v487 = vtanh.pop %v486
    %489 = vrot.lane.b32.xlu0 %v487, 64
    %v490 = vpop.permute.xlu0 %489
    %v492 = vmul.f32 %v471, %v490
    %494 = vrot.lane.b32.xlu0 %v492, 32
    %v495 = vpop.permute.xlu0 %494
    %v496 = vsel %vm155, %v495, 0
    %498 = vmatpush.msra.mxu0 0.0
    %499 = vmatpush.msra.mxu0 0.0
    %500 = vmatpush.msra.mxu0 0.0
    %501 = vmatpush.msra.mxu0 0.0
    %502 = vmatpush.msra.mxu0 0.0
    %503 = vmatpush.msra.mxu0 0.0
    %504 = vmatpush.msra.mxu0 0.0
    %505 = vmatpush.msra.mxu0 0.0
    %506 = vmatpush.msra.mxu0 0.0
    %507 = vmatpush.msra.mxu0 0.0
    %508 = vmatpush.msra.mxu0 0.0
    %509 = vmatpush.msra.mxu0 0.0
    %510 = vmatpush.msra.mxu0 %v154
    %511 = vmatpush.msra.mxu0 %v153
    %512 = vmatpush.msra.mxu0 %v152
    %513 = vmatpush.msra.mxu0 %v151
    %514 = vmatmul.f32.gmra.mxu0 %v496
    %v515 = vpop.f32.mrf.mxu0
    %v516 = vadd.f32 0.0, %v515
    %517 = vdwg.mxu0
    %v519 = vrot.slane %v516, 6
    %v521 = vadd.f32 %v149, %v519
    %v522 = vxor.u32 %v521, 2147483648
    %v523 = vmul.f32 %v522, 1.442695
    %v524 = vpow.pop %v523
    %v525 = vadd.f32 %v524, 1.0
    %v526 = vrcp.pop %v525
    %v527 = vmul.f32 %v525, %v526
    %v528 = vsub.f32 1.0, %v527
    %v529 = vmul.f32 %v526, %v528
    %v530 = vadd.f32 %v526, %v529
    %vm531 = vweird.f32 %v525
    %vm532 = vweird.f32 %v526
    %vm533 = vmor %vm531, %vm532
    %v534 = vsel %vm533, %v526, %v530
    %v535 = vand.u32 2147483647, %v525
    %vm536 = vcmp.eq.f32.partialorder %v535, 8.507059e+37
    %v537 = vand.u32 %v525, 2147483648
    %v538 = vor.u32 1.1754944e-38, %v537
    %v539 = vsel %vm536, %v538, %v534
    %v540 = vmul.f32 1.0, %v539
    %v541 = vtanh.pop %v521
    %v543 = vrot.slane %v486, 6
    %v545 = vmul.f32 %v540, %v543
    %547 = vrot.lane.b32.xlu0 %v541, 64
    %v548 = vpop.permute.xlu0 %547
    %v550 = vmul.f32 %v540, %v548
    %552 = vrot.lane.b32.xlu0 %v550, 32
    %v553 = vpop.permute.xlu0 %552
    %v555 = vadd.f32 %v545, %v553
    %v556 = vtanh.pop %v555
    %558 = vrot.lane.b32.xlu0 %v556, 64
    %v559 = vpop.permute.xlu0 %558
    %v561 = vmul.f32 %v540, %v559
    %v563 = vrot.slane %v561, 2
    %564 = vrot.lane.b32.xlu0 %v563, 32
    %v565 = vpop.permute.xlu0 %564
    %v566 = vsel %vm155, %v565, 0
    %568 = vmatpush.msra.mxu0 0.0
    %569 = vmatpush.msra.mxu0 0.0
    %570 = vmatpush.msra.mxu0 0.0
    %571 = vmatpush.msra.mxu0 0.0
    %572 = vmatpush.msra.mxu0 0.0
    %573 = vmatpush.msra.mxu0 0.0
    %574 = vmatpush.msra.mxu0 0.0
    %575 = vmatpush.msra.mxu0 0.0
    %576 = vmatpush.msra.mxu0 0.0
    %577 = vmatpush.msra.mxu0 0.0
    %578 = vmatpush.msra.mxu0 0.0
    %579 = vmatpush.msra.mxu0 0.0
    %580 = vmatpush.msra.mxu0 %v154
    %581 = vmatpush.msra.mxu0 %v153
    %582 = vmatpush.msra.mxu0 %v152
    %583 = vmatpush.msra.mxu0 %v151
    %584 = vmatmul.f32.gmra.mxu0 %v566
    %v585 = vpop.f32.mrf.mxu0
    %v586 = vadd.f32 0.0, %v585
    %587 = vdwg.mxu0
    %v589 = vrot.slane %v586, 4
    %v591 = vadd.f32 %v149, %v589
    %v592 = vxor.u32 %v591, 2147483648
    %v593 = vmul.f32 %v592, 1.442695
    %v594 = vpow.pop %v593
    %v595 = vadd.f32 %v594, 1.0
    %v596 = vrcp.pop %v595
    %v597 = vmul.f32 %v595, %v596
    %v598 = vsub.f32 1.0, %v597
    %v599 = vmul.f32 %v596, %v598
    %v600 = vadd.f32 %v596, %v599
    %vm601 = vweird.f32 %v595
    %vm602 = vweird.f32 %v596
    %vm603 = vmor %vm601, %vm602
    %v604 = vsel %vm603, %v596, %v600
    %v605 = vand.u32 2147483647, %v595
    %vm606 = vcmp.eq.f32.partialorder %v605, 8.507059e+37
    %v607 = vand.u32 %v595, 2147483648
    %v608 = vor.u32 1.1754944e-38, %v607
    %v609 = vsel %vm606, %v608, %v604
    %v610 = vmul.f32 1.0, %v609
    %v611 = vtanh.pop %v591
    %v613 = vrot.slane %v555, 6
    %v615 = vmul.f32 %v610, %v613
    %617 = vrot.lane.b32.xlu0 %v611, 64
    %v618 = vpop.permute.xlu0 %617
    %v620 = vmul.f32 %v610, %v618
    %622 = vrot.lane.b32.xlu0 %v620, 32
    %v623 = vpop.permute.xlu0 %622
    %v625 = vadd.f32 %v615, %v623
    %v626 = vtanh.pop %v625
    %628 = vrot.lane.b32.xlu0 %v626, 64
    %v629 = vpop.permute.xlu0 %628
    %v631 = vmul.f32 %v610, %v629
    %v633 = vrot.slane %v631, 4
    %634 = vrot.lane.b32.xlu0 %v633, 32
    %v635 = vpop.permute.xlu0 %634
    %v636 = vsel %vm155, %v635, 0
    %638 = vmatpush.msra.mxu0 0.0
    %639 = vmatpush.msra.mxu0 0.0
    %640 = vmatpush.msra.mxu0 0.0
    %641 = vmatpush.msra.mxu0 0.0
    %642 = vmatpush.msra.mxu0 0.0
    %643 = vmatpush.msra.mxu0 0.0
    %644 = vmatpush.msra.mxu0 0.0
    %645 = vmatpush.msra.mxu0 0.0
    %646 = vmatpush.msra.mxu0 0.0
    %647 = vmatpush.msra.mxu0 0.0
    %648 = vmatpush.msra.mxu0 0.0
    %649 = vmatpush.msra.mxu0 0.0
    %650 = vmatpush.msra.mxu0 %v154
    %651 = vmatpush.msra.mxu0 %v153
    %652 = vmatpush.msra.mxu0 %v152
    %653 = vmatpush.msra.mxu0 %v151
    %654 = vmatmul.f32.gmra.mxu0 %v636
    %v655 = vpop.f32.mrf.mxu0
    %v656 = vadd.f32 0.0, %v655
    %657 = vdwg.mxu0
    %v659 = vrot.slane %v656, 2
    %v661 = vadd.f32 %v149, %v659
    %v662 = vxor.u32 %v661, 2147483648
    %v663 = vmul.f32 %v662, 1.442695
    %v664 = vpow.pop %v663
    %v665 = vadd.f32 %v664, 1.0
    %v666 = vrcp.pop %v665
    %v667 = vmul.f32 %v665, %v666
    %v668 = vsub.f32 1.0, %v667
    %v669 = vmul.f32 %v666, %v668
    %v670 = vadd.f32 %v666, %v669
    %vm671 = vweird.f32 %v665
    %vm672 = vweird.f32 %v666
    %vm673 = vmor %vm671, %vm672
    %v674 = vsel %vm673, %v666, %v670
    %v675 = vand.u32 2147483647, %v665
    %vm676 = vcmp.eq.f32.partialorder %v675, 8.507059e+37
    %v677 = vand.u32 %v665, 2147483648
    %v678 = vor.u32 1.1754944e-38, %v677
    %v679 = vsel %vm676, %v678, %v674
    %v680 = vmul.f32 1.0, %v679
    %v681 = vtanh.pop %v661
    %v683 = vrot.slane %v625, 6
    %v685 = vmul.f32 %v680, %v683
    %687 = vrot.lane.b32.xlu0 %v681, 64
    %v688 = vpop.permute.xlu0 %687
    %v690 = vmul.f32 %v680, %v688
    %692 = vrot.lane.b32.xlu0 %v690, 32
    %v693 = vpop.permute.xlu0 %692
    %v695 = vadd.f32 %v685, %v693
    %v696 = vtanh.pop %v695
    %698 = vrot.lane.b32.xlu0 %v696, 64
    %v699 = vpop.permute.xlu0 %698
    %v701 = vmul.f32 %v680, %v699
    %v702 = vld [vmem:[%s5] sm:$0xff]
    %v703 = vld [vmem:[%s5 + $0x8] sm:$0xff]
    %v704 = vld [vmem:[%s6] sm:$0x1]
    %v706 = vperm.slane %v704, 0
    %v708 = vrot.slane %v114, 6
    %v709 = vsel %vm121, %v708, 0
    %711 = vmatpush.msra.mxu0 0.0
    %712 = vmatpush.msra.mxu0 0.0
    %713 = vmatpush.msra.mxu0 0.0
    %714 = vmatpush.msra.mxu0 0.0
    %715 = vmatpush.msra.mxu0 0.0
    %716 = vmatpush.msra.mxu0 0.0
    %717 = vmatpush.msra.mxu0 0.0
    %718 = vmatpush.msra.mxu0 0.0
    %719 = vmatpush.msra.mxu0 0.0
    %720 = vmatpush.msra.mxu0 0.0
    %721 = vmatpush.msra.mxu0 0.0
    %722 = vmatpush.msra.mxu0 0.0
    %723 = vmatpush.msra.mxu0 0.0
    %724 = vmatpush.msra.mxu0 0.0
    %725 = vmatpush.msra.mxu0 %v703
    %726 = vmatpush.msra.mxu0 %v702
    %727 = vmatmul.f32.gmra.mxu0 %v709
    %v728 = vpop.f32.mrf.mxu0
    %v729 = vadd.f32 %v706, %v728
    %730 = vdwg.mxu0
    %v731 = vxor.u32 %v729, 2147483648
    %v732 = vmul.f32 %v731, 1.442695
    %v733 = vpow.pop %v732
    %v734 = vadd.f32 %v733, 1.0
    %v735 = vrcp.pop %v734
    %v736 = vmul.f32 %v734, %v735
    %v737 = vsub.f32 1.0, %v736
    %v738 = vmul.f32 %v735, %v737
    %v739 = vadd.f32 %v735, %v738
    %vm740 = vweird.f32 %v734
    %vm741 = vweird.f32 %v735
    %vm742 = vmor %vm740, %vm741
    %v743 = vsel %vm742, %v735, %v739
    %v744 = vand.u32 2147483647, %v734
    %vm745 = vcmp.eq.f32.partialorder %v744, 8.507059e+37
    %v746 = vand.u32 %v734, 2147483648
    %v747 = vor.u32 1.1754944e-38, %v746
    %v748 = vsel %vm745, %v747, %v743
    %v749 = vmul.f32 1.0, %v748
    %v750 = vtanh.pop %v729
    %v751 = vmul.f32 %v749, 0.0
    %753 = vrot.lane.b32.xlu0 %v750, 64
    %v754 = vpop.permute.xlu0 %753
    %v756 = vmul.f32 %v749, %v754
    %758 = vrot.lane.b32.xlu0 %v756, 32
    %v759 = vpop.permute.xlu0 %758
    %v761 = vadd.f32 %v751, %v759
    %v762 = vtanh.pop %v761
    %764 = vrot.lane.b32.xlu0 %v762, 64
    %v765 = vpop.permute.xlu0 %764
    %v767 = vmul.f32 %v749, %v765
    %v768 = vld [vmem:[%s7] sm:$0xff]
    %v769 = vld [vmem:[%s7 + $0x8] sm:$0xff]
    %v770 = vld [vmem:[%s7 + $0x10] sm:$0xff]
    %v771 = vld [vmem:[%s7 + $0x18] sm:$0xff]
    %v772 = vld [vmem:[%s8] sm:$0xff]
    %v773 = vld [vmem:[%s8 + $0x8] sm:$0xff]
    %v774 = vld [vmem:[%s8 + $0x10] sm:$0xff]
    %v775 = vld [vmem:[%s8 + $0x18] sm:$0xff]
    %777 = vrot.lane.b32.xlu0 %v767, 32
    %v778 = vpop.permute.xlu0 %777
    %v779 = vsel %vm155, %v778, 0
    %781 = vmatpush.msra.mxu0 0.0
    %782 = vmatpush.msra.mxu0 0.0
    %783 = vmatpush.msra.mxu0 0.0
    %784 = vmatpush.msra.mxu0 0.0
    %785 = vmatpush.msra.mxu0 0.0
    %786 = vmatpush.msra.mxu0 0.0
    %787 = vmatpush.msra.mxu0 0.0
    %788 = vmatpush.msra.mxu0 0.0
    %789 = vmatpush.msra.mxu0 0.0
    %790 = vmatpush.msra.mxu0 0.0
    %791 = vmatpush.msra.mxu0 0.0
    %792 = vmatpush.msra.mxu0 0.0
    %793 = vmatpush.msra.mxu0 %v775
    %794 = vmatpush.msra.mxu0 %v774
    %795 = vmatpush.msra.mxu0 %v773
    %796 = vmatpush.msra.mxu0 %v772
    %797 = vmatmul.f32.gmra.mxu0 %v779
    %v798 = vpop.f32.mrf.mxu0
    %v799 = vadd.f32 0.0, %v798
    %800 = vdwg.mxu0
    %v802 = vrot.slane %v701, 6
    %803 = vrot.lane.b32.xlu0 %v802, 32
    %v804 = vpop.permute.xlu0 %803
    %v805 = vsel %vm155, %v804, 0
    %807 = vmatpush.msra.mxu0 0.0
    %808 = vmatpush.msra.mxu0 0.0
    %809 = vmatpush.msra.mxu0 0.0
    %810 = vmatpush.msra.mxu0 0.0
    %811 = vmatpush.msra.mxu0 0.0
    %812 = vmatpush.msra.mxu0 0.0
    %813 = vmatpush.msra.mxu0 0.0
    %814 = vmatpush.msra.mxu0 0.0
    %815 = vmatpush.msra.mxu0 0.0
    %816 = vmatpush.msra.mxu0 0.0
    %817 = vmatpush.msra.mxu0 0.0
    %818 = vmatpush.msra.mxu0 0.0
    %819 = vmatpush.msra.mxu0 %v771
    %820 = vmatpush.msra.mxu0 %v770
    %821 = vmatpush.msra.mxu0 %v769
    %822 = vmatpush.msra.mxu0 %v768
    %823 = vmatmul.f32.gmra.mxu0 %v805
    %v824 = vpop.f32.mrf.mxu0
    %v825 = vadd.f32 %v799, %v824
    %826 = vdwg.mxu0
    %v827 = vld [vmem:[%s9] sm:$0x1]
    %v829 = vperm.slane %v827, 0
    %v831 = vadd.f32 %v825, %v829
    %v832 = vmax.f32 %v831, 0.0
    %v833 = vld [vmem:[%s10] sm:$0xff]
    %v834 = vld [vmem:[%s10 + $0x8] sm:$0xff]
    %v835 = vld [vmem:[%s10 + $0x10] sm:$0xff]
    %v836 = vld [vmem:[%s11] sm:$0x1]
    %v838 = vperm.slane %v836, 0
    %vm840 = vcmask 195584
    %v842 = vsel %vm840, %v832, 0
    %844 = vmatpush.msra.mxu0 0.0
    %845 = vmatpush.msra.mxu0 0.0
    %846 = vmatpush.msra.mxu0 0.0
    %847 = vmatpush.msra.mxu0 0.0
    %848 = vmatpush.msra.mxu0 0.0
    %849 = vmatpush.msra.mxu0 0.0
    %850 = vmatpush.msra.mxu0 0.0
    %851 = vmatpush.msra.mxu0 0.0
    %852 = vmatpush.msra.mxu0 0.0
    %853 = vmatpush.msra.mxu0 0.0
    %854 = vmatpush.msra.mxu0 0.0
    %855 = vmatpush.msra.mxu0 0.0
    %856 = vmatpush.msra.mxu0 0.0
    %857 = vmatpush.msra.mxu0 %v835
    %858 = vmatpush.msra.mxu0 %v834
    %859 = vmatpush.msra.mxu0 %v833
    %860 = vmatmul.f32.gmra.mxu0 %v842
    %v861 = vpop.f32.mrf.mxu0
    %v862 = vadd.f32 %v838, %v861
    %863 = vdwg.mxu0
    %vm864 = vcmask 9216
    %865 = vst.msk [vmem:[#allocation5] sm:$0x3] %vm864, %v862
    // Predicated region
    $region46: #{tpu_custom_call.1} parent=1 // pred_check
      _
    $region47: #{tpu_custom_call.1} parent=1 // pred_check_branch
      %867 = sbr.rel (0) target = $region49
    $region48: #{tpu_custom_call.1} parent=1 // pred_region
      %869 = vsyncadd [#allocation6], 0
      %s871 = sshll.u32 [#allocation5], 4
      %s872 = int_to_ptr.vmem [resolvable:$true] %s871
      %s873 = sshll.u32 %s12, 4
      %s874 = int_to_ptr.hbm [resolvable:$true] %s873
      %876 = dma.vmem_to_hbm [thread:$0]  %s872, 32, %s874, [#allocation6]
    $region49: #{tpu_custom_call.1} parent=1 // pred_fallthru
      _
    // Predicated region
    $region50: #{tpu_custom_call.1} parent=1 // pred_check
      _
    $region51: #{tpu_custom_call.1} parent=1 // pred_check_branch
      %878 = sbr.rel (0) target = $region53
    $region52: #{tpu_custom_call.1} parent=1 // pred_region
      %880 = dma.done [#allocation6], 32
    $region53: #{tpu_custom_call.1} parent=1 // pred_fallthru
      _
    %881 = vsyncpa [#allocation6], 1

</llo_original>
